<compile_context>
chip_gen: v7x
topology: tpu7x:2x2x1
jax: 0.10.0
libtpu: 0.0.40
codegen_flags: <defaults>
</compile_context>

<pallas_src>
import functools

import jax
import jax.numpy as jnp
from jax.experimental import pallas as pl
from jax.experimental.pallas import tpu as pltpu


# ----------------------------------------------------------------------------
# helpers
# ----------------------------------------------------------------------------
def _round_up(x, m):
    return ((x + m - 1) // m) * m


# ----------------------------------------------------------------------------
# Pallas kernels
# ----------------------------------------------------------------------------
def _matmul_kernel(a_ref, b_ref, o_ref, acc_ref):
    """One (row-tile, K-tile) step of o = a @ b with an fp32 accumulator."""
    k = pl.program_id(1)

    @pl.when(k == 0)
    def _():
        acc_ref[...] = jnp.zeros_like(acc_ref)

    acc_ref[...] += jnp.dot(a_ref[...], b_ref[...],
                            preferred_element_type=jnp.float32)

    @pl.when(k == pl.num_programs(1) - 1)
    def _():
        o_ref[...] = acc_ref[...].astype(o_ref.dtype)


def pallas_matmul(a, b, *, tm=256, tk=256):
    """Tiled o = a @ b on the MXU.  a: [M, K], b: [K, D] -> fp32 [M, D].

    Pads M / K / D so block shapes satisfy the (sublane, 128) constraints and
    so the output store is lane-dense (D padded to a multiple of 128).
    """
    m, k = a.shape
    k2, d = b.shape
    assert k == k2, (a.shape, b.shape)

    # Sublane multiple depends on element width (8 for fp32, 16 for bf16).
    sub = max(8, 32 // jnp.dtype(a.dtype).itemsize)
    tm_eff = min(tm, _round_up(m, sub))
    tk_eff = min(tk, _round_up(k, 128))
    mp = _round_up(m, tm_eff)
    kp = _round_up(k, tk_eff)
    dp = _round_up(d, 128)

    if (mp, kp) != (m, k):
        a = jnp.pad(a, ((0, mp - m), (0, kp - k)))
    if (kp, dp) != (k, d):
        b = jnp.pad(b, ((0, kp - k), (0, dp - d)))

    out = pl.pallas_call(
        _matmul_kernel,
        out_shape=jax.ShapeDtypeStruct((mp, dp), jnp.float32),
        grid_spec=pltpu.PrefetchScalarGridSpec(
            num_scalar_prefetch=0,
            grid=(mp // tm_eff, kp // tk_eff),
            in_specs=[
                pl.BlockSpec((tm_eff, tk_eff), lambda i, kk: (i, kk)),
                pl.BlockSpec((tk_eff, dp), lambda i, kk: (kk, 0)),
            ],
            out_specs=pl.BlockSpec((tm_eff, dp), lambda i, kk: (i, 0)),
            scratch_shapes=[pltpu.VMEM((tm_eff, dp), jnp.float32)],
        ),
        compiler_params=pltpu.CompilerParams(
            dimension_semantics=("parallel", "arbitrary"),
            vmem_limit_bytes=32 * 1024 * 1024,
        ),
    )(a, b)

    if (mp, dp) != (m, d):
        out = out[:m, :d]
    return out


def _linear_kernel(x_ref, wt_ref, b_ref, o_ref):
    """y = x @ W^T + b (W passed pre-transposed, output lanes padded dense)."""
    o_ref[...] = (
        jnp.dot(x_ref[...], wt_ref[...], preferred_element_type=jnp.float32)
        + b_ref[...]
    )


def pallas_linear(x, w, b, *, tm=256):
    """x: [B, D], w: [Dout, D] (torch Linear layout), b: [Dout] -> [B, Dout]."""
    bsz, d = x.shape
    dout, din = w.shape
    assert din == d
    dout_p = _round_up(dout, 128)                       # lane-dense output store
    wt = jnp.pad(w.T, ((0, 0), (0, dout_p - dout)))     # [D, Dout_p]
    b2 = jnp.pad(b, (0, dout_p - dout)).reshape(1, dout_p)

    tm_eff = min(tm, _round_up(bsz, 8))
    bp = _round_up(bsz, tm_eff)
    if bp != bsz:
        x = jnp.pad(x, ((0, bp - bsz), (0, 0)))

    out = pl.pallas_call(
        _linear_kernel,
        out_shape=jax.ShapeDtypeStruct((bp, dout_p), jnp.float32),
        grid_spec=pltpu.PrefetchScalarGridSpec(
            num_scalar_prefetch=0,
            grid=(bp // tm_eff,),
            in_specs=[
                pl.BlockSpec((tm_eff, d), lambda i: (i, 0)),
                pl.BlockSpec((d, dout_p), lambda i: (0, 0)),
                pl.BlockSpec((1, dout_p), lambda i: (0, 0)),
            ],
            out_specs=pl.BlockSpec((tm_eff, dout_p), lambda i: (i, 0)),
        ),
        compiler_params=pltpu.CompilerParams(
            dimension_semantics=("parallel",),
            vmem_limit_bytes=32 * 1024 * 1024,
        ),
    )(x, wt, b2)
    return out[:bsz, :dout]


# ----------------------------------------------------------------------------
# LightGCN propagation (bipartite block form, fused feature axis)
# ----------------------------------------------------------------------------
def lgcn_propagate(r_norm, user_emb, item_emb, *, n_layers=3,
                   compute_dtype=jnp.float32, tm=256, tk=256):
    """Mean over (n_layers + 1) hops of A @ E with A = [[0, R], [R^T, 0]].

    Each hop is two block matmuls, so only the [U, I] block (and its
    transpose) is streamed — half the adjacency bytes / FLOPs of dense [N, N].
    """
    u, d = user_emb.shape
    dp = _round_up(d, 128)  # keep activations 128-lane wide across hops
    eu = jnp.pad(user_emb.astype(jnp.float32), ((0, 0), (0, dp - d)))
    ei = jnp.pad(item_emb.astype(jnp.float32), ((0, 0), (0, dp - d)))

    r_ui = r_norm.astype(compute_dtype)      # [U, I]
    r_iu = r_norm.T.astype(compute_dtype)    # [I, U]

    acc_u, acc_i = eu, ei
    cur_u, cur_i = eu, ei
    for _ in range(n_layers):
        nxt_u = pallas_matmul(r_ui, cur_i.astype(compute_dtype), tm=tm, tk=tk)
        nxt_i = pallas_matmul(r_iu, cur_u.astype(compute_dtype), tm=tm, tk=tk)
        cur_u, cur_i = nxt_u, nxt_i
        acc_u = acc_u + cur_u
        acc_i = acc_i + cur_i

    scale = 1.0 / float(n_layers + 1)
    return (acc_u * scale)[:, :d], (acc_i * scale)[:, :d]


# ----------------------------------------------------------------------------
# BUIR_NB forward (glue in JAX)
# ----------------------------------------------------------------------------
@functools.partial(jax.jit,
                   static_argnames=("n_layers", "compute_dtype", "tm", "tk"))
def buir_nb_forward(params, r_norm, users, items, *, n_layers=3,
                    compute_dtype=jnp.float32, tm=256, tk=256):
    d = params["pred_w"].shape[0]

    # Fuse online + target encoders along the feature axis: the adjacency is
    # streamed from HBM once per hop instead of twice.
    eu = jnp.concatenate(
        [params["online"]["user_emb"], params["target"]["user_emb"]], axis=1)
    ei = jnp.concatenate(
        [params["online"]["item_emb"], params["target"]["item_emb"]], axis=1)

    u_all, i_all = lgcn_propagate(r_norm, eu, ei, n_layers=n_layers,
                                  compute_dtype=compute_dtype, tm=tm, tk=tk)

    u_online, u_target = u_all[:, :d], u_all[:, d:]
    i_online, i_target = i_all[:, :d], i_all[:, d:]

    # Row gather by indices (glue).
    u_on, u_tg = u_online[users], u_target[users]
    i_on, i_tg = i_online[items], i_target[items]

    # One fused predictor call on the stacked [2B, D] batch.
    stacked = jnp.concatenate([u_on, i_on], axis=0)
    pred = pallas_linear(stacked, params["pred_w"], params["pred_b"])
    bsz = users.shape[0]
    u_pred, i_pred = pred[:bsz], pred[bsz:]
    return u_pred, u_tg, i_pred, i_tg


# ----------------------------------------------------------------------------
# Parameter / adjacency construction
# ----------------------------------------------------------------------------
def xavier_uniform(key, shape):
    fan_in, fan_out = shape
    a = jnp.sqrt(6.0 / (fan_in + fan_out))
    return jax.random.uniform(key, shape, jnp.float32, -a, a)


def build_norm_adj(key, user_count, item_count, density=0.05):
    """Normalized bipartite block R_norm [U, I] and the dense [N, N] A (ref)."""
    r = (jax.random.uniform(key, (user_count, item_count)) < density).astype(jnp.float32)
    deg_u = jnp.sum(r, axis=1)
    deg_i = jnp.sum(r, axis=0)
    du = jnp.where(deg_u > 0, 1.0 / jnp.sqrt(jnp.maximum(deg_u, 1e-12)), 0.0)
    di = jnp.where(deg_i > 0, 1.0 / jnp.sqrt(jnp.maximum(deg_i, 1e-12)), 0.0)
    r_norm = r * du[:, None] * di[None, :]
    n = user_count + item_count
    a_dense = jnp.zeros((n, n), jnp.float32)
    a_dense = a_dense.at[:user_count, user_count:].set(r_norm)
    a_dense = a_dense.at[user_count:, :user_count].set(r_norm.T)
    return r_norm, a_dense


def init_params(key, user_count, item_count, latent_size, momentum=0.995):
    k_u, k_i, k_w, k_b, k_du, k_di = jax.random.split(key, 6)
    user_emb = xavier_uniform(k_u, (user_count, latent_size))
    item_emb = xavier_uniform(k_i, (item_count, latent_size))
    bound = 1.0 / jnp.sqrt(float(latent_size))
    pred_w = jax.random.uniform(k_w, (latent_size, latent_size), jnp.float32, -bound, bound)
    pred_b = jax.random.uniform(k_b, (latent_size,), jnp.float32, -bound, bound)
    online = {"user_emb": user_emb, "item_emb": item_emb}
    # _init_target copies online -> target; we additionally emulate one
    # _update_target momentum step (with a perturbed "online" state) so the
    # online / target tables differ and the fused-encoder split is exercised.
    target = {
        "user_emb": momentum * user_emb + (1.0 - momentum)
        * (user_emb + 0.1 * jax.random.normal(k_du, user_emb.shape)),
        "item_emb": momentum * item_emb + (1.0 - momentum)
        * (item_emb + 0.1 * jax.random.normal(k_di, item_emb.shape)),
    }
    return {"online": online, "target": target, "pred_w": pred_w, "pred_b": pred_b}


# ----------------------------------------------------------------------------
# Pure-JAX reference
# ----------------------------------------------------------------------------
def reference_forward(params, a_dense, users, items, user_count, n_layers=3):
    hp = jax.lax.Precision.HIGHEST

    def enc(p):
        ego = jnp.concatenate([p["user_emb"], p["item_emb"]], axis=0)
        acc, e = ego, ego
        for _ in range(n_layers):
            e = jnp.matmul(a_dense, e, precision=hp)
            acc = acc + e
        all_emb = acc / (n_layers + 1)
        return all_emb[:user_count][users], all_emb[user_count:][items]

    u_on, i_on = enc(params["online"])
    u_tg, i_tg = enc(params["target"])
    w, b = params["pred_w"], params["pred_b"]
    return (jnp.matmul(u_on, w.T, precision=hp) + b, u_tg,
            jnp.matmul(i_on, w.T, precision=hp) + b, i_tg)


# ----------------------------------------------------------------------------
# entry point
# ----------------------------------------------------------------------------
if __name__ == "__main__":
    user_count = 200
    item_count = 312
    latent_size = 32
    n_layers = 3
    batch = 16
    # Small tiles so the tiled grid (multiple row tiles x multiple K tiles) is
    # actually exercised at these test sizes; production default is 256x256.
    tm, tk = 128, 128

    key = jax.random.PRNGKey(0)
    k_adj, k_params, k_u, k_i = jax.random.split(key, 4)

    r_norm, a_dense = build_norm_adj(k_adj, user_count, item_count)
    params = init_params(k_params, user_count, item_count, latent_size)

    users = jax.random.randint(k_u, (batch,), 0, user_count)
    items = jax.random.randint(k_i, (batch,), 0, item_count)

    ref = reference_forward(params, a_dense, users, items, user_count, n_layers)

    # fp32 path (bit-faithful to the module).
    out = buir_nb_forward(params, r_norm, users, items, n_layers=n_layers,
                          compute_dtype=jnp.float32, tm=tm, tk=tk)
    out = jax.block_until_ready(out)
    for o, r in zip(out, ref):
        assert o.shape == r.shape, (o.shape, r.shape)
        assert jnp.allclose(o, r, atol=5e-5, rtol=5e-5), "fp32 mismatch vs reference"

    # bf16-adjacency path (halves HBM traffic for A, native MXU dtype); fp32
    # accumulation, so only a looser tolerance is needed.
    out_bf16 = jax.block_until_ready(
        buir_nb_forward(params, r_norm, users, items, n_layers=n_layers,
                        compute_dtype=jnp.bfloat16, tm=tm, tk=tk))
    for o, r in zip(out_bf16, ref):
        rel = float(jnp.max(jnp.abs(o - r)) / (jnp.max(jnp.abs(r)) + 1e-12))
        assert rel < 5e-2, f"bf16 mismatch vs reference (rel={rel})"

    print("KERNEL_OK")
</pallas_src>

<mosaic_0001>
module attributes {stable_mosaic.version = 11 : i64} {
  func.func @_matmul_kernel(%arg0: i32, %arg1: i32, %arg2: memref<128x128xf32, #tpu.memory_space<vmem>>, %arg3: memref<128x128xf32, #tpu.memory_space<vmem>>, %arg4: memref<128x128xf32, #tpu.memory_space<vmem>>, %arg5: memref<128x128xf32, #tpu.memory_space<vmem>>) attributes {dimension_semantics = [#tpu.dimension_semantics<parallel>, #tpu.dimension_semantics<arbitrary>], iteration_bounds = array<i64: 2, 3>, scalar_prefetch = 0 : i64, scratch_operands = 1 : i64, tpu.core_type = #tpu.core_type<tc>, window_params = [{transform_indices = @transform_0, window_bounds = array<i64: 128, 128>}, {transform_indices = @transform_1, window_bounds = array<i64: 128, 128>}, {transform_indices = @transform_2, window_bounds = array<i64: 128, 128>}]} {
    %c0_i32 = arith.constant 0 : i32
    %0 = arith.cmpi eq, %arg1, %c0_i32 : i32
    %1 = arith.extui %0 : i1 to i32
    %c0_i32_0 = arith.constant 0 : i32
    %2 = arith.cmpi ne, %1, %c0_i32_0 : i32
    scf.if %2 {
      %cst_9 = arith.constant 0.000000e+00 : f32
      %12 = vector.broadcast %cst_9 : f32 to vector<128x128xf32>
      %c0_10 = arith.constant 0 : index
      %c0_11 = arith.constant 0 : index
      %13 = vector.load %arg5[%c0_10, %c0_11] : memref<128x128xf32, #tpu.memory_space<vmem>>, vector<128x128xf32>
      tpu.vector_store %arg5[%c0_10, %c0_11], %12 {strides = array<i32>} : memref<128x128xf32, #tpu.memory_space<vmem>>, vector<128x128xf32>,
    } else {
    }
    %c0 = arith.constant 0 : index
    %c0_1 = arith.constant 0 : index
    %3 = vector.load %arg5[%c0, %c0_1] : memref<128x128xf32, #tpu.memory_space<vmem>>, vector<128x128xf32>
    %c0_2 = arith.constant 0 : index
    %c0_3 = arith.constant 0 : index
    %4 = vector.load %arg2[%c0_2, %c0_3] : memref<128x128xf32, #tpu.memory_space<vmem>>, vector<128x128xf32>
    %c0_4 = arith.constant 0 : index
    %c0_5 = arith.constant 0 : index
    %5 = vector.load %arg3[%c0_4, %c0_5] : memref<128x128xf32, #tpu.memory_space<vmem>>, vector<128x128xf32>
    %cst = arith.constant dense<0.000000e+00> : vector<128x128xf32>
    %6 = tpu.matmul %4, %5, %cst {dimension_numbers = #tpu.dot_dimension_numbers<[1], [0], [0], [1], [0, 0, 1, 1], [], []>} : vector<128x128xf32>, vector<128x128xf32>, vector<128x128xf32> -> vector<128x128xf32>
    %7 = arith.addf %3, %6 : vector<128x128xf32>
    %c0_6 = arith.constant 0 : index
    %c0_7 = arith.constant 0 : index
    %8 = vector.load %arg5[%c0_6, %c0_7] : memref<128x128xf32, #tpu.memory_space<vmem>>, vector<128x128xf32>
    tpu.vector_store %arg5[%c0_6, %c0_7], %7 {strides = array<i32>} : memref<128x128xf32, #tpu.memory_space<vmem>>, vector<128x128xf32>,
    %c2_i32 = arith.constant 2 : i32
    %9 = arith.cmpi eq, %arg1, %c2_i32 : i32
    %10 = arith.extui %9 : i1 to i32
    %c0_i32_8 = arith.constant 0 : i32
    %11 = arith.cmpi ne, %10, %c0_i32_8 : i32
    scf.if %11 {
      %c0_9 = arith.constant 0 : index
      %c0_10 = arith.constant 0 : index
      %12 = vector.load %arg5[%c0_9, %c0_10] : memref<128x128xf32, #tpu.memory_space<vmem>>, vector<128x128xf32>
      %c0_11 = arith.constant 0 : index
      %c0_12 = arith.constant 0 : index
      %13 = vector.load %arg4[%c0_11, %c0_12] : memref<128x128xf32, #tpu.memory_space<vmem>>, vector<128x128xf32>
      tpu.vector_store %arg4[%c0_11, %c0_12], %12 {strides = array<i32>} : memref<128x128xf32, #tpu.memory_space<vmem>>, vector<128x128xf32>,
    } else {
    }
    return
  }
  func.func @transform_0(%arg0: i32, %arg1: i32) -> (i32, i32) {
    %c0_i32 = arith.constant 0 : i32
    return %arg0, %arg1 : i32, i32
  }
  func.func @transform_1(%arg0: i32, %arg1: i32) -> (i32, i32) {
    %c0_i32 = arith.constant 0 : i32
    %c0_i32_0 = arith.constant 0 : i32
    return %arg1, %c0_i32 : i32, i32
  }
  func.func @transform_2(%arg0: i32, %arg1: i32) -> (i32, i32) {
    %c0_i32 = arith.constant 0 : i32
    %c0_i32_0 = arith.constant 0 : i32
    return %arg0, %c0_i32 : i32, i32
  }
}

module attributes {stable_mosaic.version = 11 : i64} {
  func.func @_matmul_kernel(%arg0: i32, %arg1: i32, %arg2: memref<128x128xf32, #tpu.memory_space<vmem>>, %arg3: memref<128x128xf32, #tpu.memory_space<vmem>>, %arg4: memref<128x128xf32, #tpu.memory_space<vmem>>, %arg5: memref<128x128xf32, #tpu.memory_space<vmem>>) attributes {dimension_semantics = [#tpu.dimension_semantics<parallel>, #tpu.dimension_semantics<arbitrary>], iteration_bounds = array<i64: 3, 2>, scalar_prefetch = 0 : i64, scratch_operands = 1 : i64, tpu.core_type = #tpu.core_type<tc>, window_params = [{transform_indices = @transform_0, window_bounds = array<i64: 128, 128>}, {transform_indices = @transform_1, window_bounds = array<i64: 128, 128>}, {transform_indices = @transform_2, window_bounds = array<i64: 128, 128>}]} {
    %c0_i32 = arith.constant 0 : i32
    %0 = arith.cmpi eq, %arg1, %c0_i32 : i32
    %1 = arith.extui %0 : i1 to i32
    %c0_i32_0 = arith.constant 0 : i32
    %2 = arith.cmpi ne, %1, %c0_i32_0 : i32
    scf.if %2 {
      %cst_9 = arith.constant 0.000000e+00 : f32
      %12 = vector.broadcast %cst_9 : f32 to vector<128x128xf32>
      %c0_10 = arith.constant 0 : index
      %c0_11 = arith.constant 0 : index
      %13 = vector.load %arg5[%c0_10, %c0_11] : memref<128x128xf32, #tpu.memory_space<vmem>>, vector<128x128xf32>
      tpu.vector_store %arg5[%c0_10, %c0_11], %12 {strides = array<i32>} : memref<128x128xf32, #tpu.memory_space<vmem>>, vector<128x128xf32>,
    } else {
    }
    %c0 = arith.constant 0 : index
    %c0_1 = arith.constant 0 : index
    %3 = vector.load %arg5[%c0, %c0_1] : memref<128x128xf32, #tpu.memory_space<vmem>>, vector<128x128xf32>
    %c0_2 = arith.constant 0 : index
    %c0_3 = arith.constant 0 : index
    %4 = vector.load %arg2[%c0_2, %c0_3] : memref<128x128xf32, #tpu.memory_space<vmem>>, vector<128x128xf32>
    %c0_4 = arith.constant 0 : index
    %c0_5 = arith.constant 0 : index
    %5 = vector.load %arg3[%c0_4, %c0_5] : memref<128x128xf32, #tpu.memory_space<vmem>>, vector<128x128xf32>
    %cst = arith.constant dense<0.000000e+00> : vector<128x128xf32>
    %6 = tpu.matmul %4, %5, %cst {dimension_numbers = #tpu.dot_dimension_numbers<[1], [0], [0], [1], [0, 0, 1, 1], [], []>} : vector<128x128xf32>, vector<128x128xf32>, vector<128x128xf32> -> vector<128x128xf32>
    %7 = arith.addf %3, %6 : vector<128x128xf32>
    %c0_6 = arith.constant 0 : index
    %c0_7 = arith.constant 0 : index
    %8 = vector.load %arg5[%c0_6, %c0_7] : memref<128x128xf32, #tpu.memory_space<vmem>>, vector<128x128xf32>
    tpu.vector_store %arg5[%c0_6, %c0_7], %7 {strides = array<i32>} : memref<128x128xf32, #tpu.memory_space<vmem>>, vector<128x128xf32>,
    %c1_i32 = arith.constant 1 : i32
    %9 = arith.cmpi eq, %arg1, %c1_i32 : i32
    %10 = arith.extui %9 : i1 to i32
    %c0_i32_8 = arith.constant 0 : i32
    %11 = arith.cmpi ne, %10, %c0_i32_8 : i32
    scf.if %11 {
      %c0_9 = arith.constant 0 : index
      %c0_10 = arith.constant 0 : index
      %12 = vector.load %arg5[%c0_9, %c0_10] : memref<128x128xf32, #tpu.memory_space<vmem>>, vector<128x128xf32>
      %c0_11 = arith.constant 0 : index
      %c0_12 = arith.constant 0 : index
      %13 = vector.load %arg4[%c0_11, %c0_12] : memref<128x128xf32, #tpu.memory_space<vmem>>, vector<128x128xf32>
      tpu.vector_store %arg4[%c0_11, %c0_12], %12 {strides = array<i32>} : memref<128x128xf32, #tpu.memory_space<vmem>>, vector<128x128xf32>,
    } else {
    }
    return
  }
  func.func @transform_0(%arg0: i32, %arg1: i32) -> (i32, i32) {
    %c0_i32 = arith.constant 0 : i32
    return %arg0, %arg1 : i32, i32
  }
  func.func @transform_1(%arg0: i32, %arg1: i32) -> (i32, i32) {
    %c0_i32 = arith.constant 0 : i32
    %c0_i32_0 = arith.constant 0 : i32
    return %arg1, %c0_i32 : i32, i32
  }
  func.func @transform_2(%arg0: i32, %arg1: i32) -> (i32, i32) {
    %c0_i32 = arith.constant 0 : i32
    %c0_i32_0 = arith.constant 0 : i32
    return %arg0, %c0_i32 : i32, i32
  }
}

module attributes {stable_mosaic.version = 11 : i64} {
  func.func @_linear_kernel(%arg0: i32, %arg1: memref<32x32xf32, #tpu.memory_space<vmem>>, %arg2: memref<32x128xf32, #tpu.memory_space<vmem>>, %arg3: memref<1x128xf32, #tpu.memory_space<vmem>>, %arg4: memref<32x128xf32, #tpu.memory_space<vmem>>) attributes {dimension_semantics = [#tpu.dimension_semantics<parallel>], iteration_bounds = array<i64: 1>, scalar_prefetch = 0 : i64, scratch_operands = 0 : i64, tpu.core_type = #tpu.core_type<tc>, window_params = [{transform_indices = @transform_0, window_bounds = array<i64: 32, 32>}, {pipeline_mode = #tpu.pipeline_mode<synchronous>, transform_indices = @transform_1, window_bounds = array<i64: 32, 128>}, {pipeline_mode = #tpu.pipeline_mode<synchronous>, transform_indices = @transform_2, window_bounds = array<i64: 1, 128>}, {transform_indices = @transform_3, window_bounds = array<i64: 32, 128>}]} {
    %c0 = arith.constant 0 : index
    %c0_0 = arith.constant 0 : index
    %0 = vector.load %arg1[%c0, %c0_0] : memref<32x32xf32, #tpu.memory_space<vmem>>, vector<32x32xf32>
    %c0_1 = arith.constant 0 : index
    %c0_2 = arith.constant 0 : index
    %1 = vector.load %arg2[%c0_1, %c0_2] : memref<32x128xf32, #tpu.memory_space<vmem>>, vector<32x128xf32>
    %cst = arith.constant dense<0.000000e+00> : vector<32x128xf32>
    %2 = tpu.matmul %0, %1, %cst {dimension_numbers = #tpu.dot_dimension_numbers<[1], [0], [0], [1], [0, 0, 1, 1], [], []>} : vector<32x32xf32>, vector<32x128xf32>, vector<32x128xf32> -> vector<32x128xf32>
    %c0_3 = arith.constant 0 : index
    %c0_4 = arith.constant 0 : index
    %3 = vector.load %arg3[%c0_3, %c0_4] : memref<1x128xf32, #tpu.memory_space<vmem>>, vector<1x128xf32>
    %4 = vector.broadcast %3 : vector<1x128xf32> to vector<32x128xf32>
    %5 = arith.addf %2, %4 : vector<32x128xf32>
    %c0_5 = arith.constant 0 : index
    %c0_6 = arith.constant 0 : index
    %6 = vector.load %arg4[%c0_5, %c0_6] : memref<32x128xf32, #tpu.memory_space<vmem>>, vector<32x128xf32>
    tpu.vector_store %arg4[%c0_5, %c0_6], %5 {strides = array<i32>} : memref<32x128xf32, #tpu.memory_space<vmem>>, vector<32x128xf32>,
    return
  }
  func.func @transform_0(%arg0: i32) -> (i32, i32) {
    %c0_i32 = arith.constant 0 : i32
    %c0_i32_0 = arith.constant 0 : i32
    return %arg0, %c0_i32 : i32, i32
  }
  func.func @transform_1(%arg0: i32) -> (i32, i32) {
    %c0_i32 = arith.constant 0 : i32
    %c0_i32_0 = arith.constant 0 : i32
    %c0_i32_1 = arith.constant 0 : i32
    return %c0_i32, %c0_i32_0 : i32, i32
  }
  func.func @transform_2(%arg0: i32) -> (i32, i32) {
    %c0_i32 = arith.constant 0 : i32
    %c0_i32_0 = arith.constant 0 : i32
    %c0_i32_1 = arith.constant 0 : i32
    return %c0_i32, %c0_i32_0 : i32, i32
  }
  func.func @transform_3(%arg0: i32) -> (i32, i32) {
    %c0_i32 = arith.constant 0 : i32
    %c0_i32_0 = arith.constant 0 : i32
    return %arg0, %c0_i32 : i32, i32
  }
}

</mosaic_0001>

<llo_original>
// kernel: buir_nb_forward.7
$region0: #{buir_nb_forward.7}
  #allocation0 [shape = 'u32[]', space=smem, size = 0x4, offset = 0x4, fixed_abs, tag = 'smem constant byte address 0x4 - core index']
  #allocation1 [shape = 'u32[144,128]{1,0:T(1,128)}', space=vmem, size = 0x12000, scoped, tag = 'internal scratch']
  #allocation2 [shape = 'f32[128,128]{1,0:T(8,128)}', space=vmem, size = 0x10000, scoped, tag = 'scratch operand']
  %s0 = inlined_call_operand.vmem [shape: f32[256,384], index: 0, kind: input, shape index: {}]
  %s1 = inlined_call_operand.vmem [shape: f32[384,128], index: 1, kind: input, shape index: {}]
  %s2 = inlined_call_operand.vmem [shape: f32[256,128], index: 2, kind: output, shape index: {}]
  %s3 = sld [smem:[#allocation0]]
  $region87: #{buir_nb_forward.7} parent=0
    _
  %s5 = ssub.s32 1, %s3
  %s6 = scalar_select 0, %s5, %s3
  $region1: #{buir_nb_forward.7} parent=0
    #allocation3 [shape = 'u8[131072]{0}', space=vmem, size = 0x20000, scoped, tag = 'input window, operand 0']
    loop: start=0, step=1, limit=8
    $region2: #{buir_nb_forward.7} parent=1 // loop_pre_header
      _
    $region3: #{buir_nb_forward.7} parent=1 // loop_header
      %s8 = sphi 0, %s12
      %p9 = scmp.ge.s32.totalorder %s8, 8
      %s15 = sphi 0, %s27
      %s16 = sphi 0, %s23
      %s17 = sphi 0, %s15
      %s18 = sphi 0, %s16
      %s19 = sphi 0, %s17
      %s20 = sphi 0, %s18
      %s32 = sphi 0, %s34
      %s35 = sphi 0, %s32
      %s36 = sphi 0, %s35
      %s52 = sphi 0, %s36
      %s58 = sphi 0, %s60
      %s61 = sphi 0, %s58
      %s62 = sphi 0, %s61
      %s78 = sphi 0, %s62
      %s84 = sphi 0, %s86
      %s87 = sphi 0, %s84
      %s88 = sphi 0, %s87
      %s104 = sphi 0, %s88
    $region4: #{buir_nb_forward.7} parent=1 // loop_header_branch
      %11 = sbr.rel (%p9) target = $region8
    $region5: #{buir_nb_forward.7} parent=1 // loop_body
      %s13 = ssub.s32 %s8, 1
      %s14 = ssub.s32 %s8, 2
      %s21 = sadd.s32 1, %s16
      %p22 = scmp.ge.s32.totalorder %s21, 3
      %s23 = scalar_select %p22, 0, %s21
      %s24 = sadd.s32 1, %s15
      %s25 = scalar_select %p22, %s24, %s15
      %p26 = scmp.ge.s32.totalorder %s25, 2
      %s27 = scalar_select %p26, 0, %s25
      %s28 = ssub.s32 %s15, %s27
      %s29 = ssub.s32 %s16, %s23
      %s30 = sor.u32 %s28, %s29
      %p31 = scmp.eq.s32.totalorder %s30, 0
      %s33 = sadd.s32 %s32, 1
      %s34 = scalar_select %p31, %s32, %s33
      %p37 = pneg %p31
      %p38 = scmp.eq.s32.totalorder %s8, 5
      %p39 = por %p37, %p38
      %p40 = scmp.ne.s32.totalorder %s32, %s35
      %p41 = scmp.eq.s32.totalorder %s8, 0
      %p42 = por %p40, %p41
      %p43 = scmp.ne.s32.totalorder %s32, %s35
      %p44 = scmp.eq.s32.totalorder %s13, 5
      %p45 = por %p43, %p44
      %p46 = scmp.ne.s32.totalorder %s35, %s36
      %p47 = scmp.eq.s32.totalorder %s13, 0
      %p48 = por %p46, %p47
      %p49 = scmp.ne.s32.totalorder %s35, %s36
      %p50 = scmp.eq.s32.totalorder %s14, 5
      %p51 = por %p49, %p50
      %p53 = scmp.ne.s32.totalorder %s36, %s52
      %p54 = scmp.eq.s32.totalorder %s14, 0
      %p55 = por %p53, %p54
      %s56 = ssub.s32 %s16, %s23
      %p57 = scmp.eq.s32.totalorder %s56, 0
      %s59 = sadd.s32 %s58, 1
      %s60 = scalar_select %p57, %s58, %s59
      %p63 = pneg %p57
      %p64 = scmp.eq.s32.totalorder %s8, 5
      %p65 = por %p63, %p64
      %p66 = scmp.ne.s32.totalorder %s58, %s61
      %p67 = scmp.eq.s32.totalorder %s8, 0
      %p68 = por %p66, %p67
      %p69 = scmp.ne.s32.totalorder %s58, %s61
      %p70 = scmp.eq.s32.totalorder %s13, 5
      %p71 = por %p69, %p70
      %p72 = scmp.ne.s32.totalorder %s61, %s62
      %p73 = scmp.eq.s32.totalorder %s13, 0
      %p74 = por %p72, %p73
      %p75 = scmp.ne.s32.totalorder %s61, %s62
      %p76 = scmp.eq.s32.totalorder %s14, 5
      %p77 = por %p75, %p76
      %p79 = scmp.ne.s32.totalorder %s62, %s78
      %p80 = scmp.eq.s32.totalorder %s14, 0
      %p81 = por %p79, %p80
      %s82 = ssub.s32 %s15, %s27
      %p83 = scmp.eq.s32.totalorder %s82, 0
      %s85 = sadd.s32 %s84, 1
      %s86 = scalar_select %p83, %s84, %s85
      %p89 = pneg %p83
      %p90 = scmp.eq.s32.totalorder %s8, 5
      %p91 = por %p89, %p90
      %p92 = scmp.ne.s32.totalorder %s84, %s87
      %p93 = scmp.eq.s32.totalorder %s8, 0
      %p94 = por %p92, %p93
      %p95 = scmp.ne.s32.totalorder %s84, %s87
      %p96 = scmp.eq.s32.totalorder %s13, 5
      %p97 = por %p95, %p96
      %p98 = scmp.ne.s32.totalorder %s87, %s88
      %p99 = scmp.eq.s32.totalorder %s13, 0
      %p100 = por %p98, %p99
      %p101 = scmp.ne.s32.totalorder %s87, %s88
      %p102 = scmp.eq.s32.totalorder %s14, 5
      %p103 = por %p101, %p102
      %p105 = scmp.ne.s32.totalorder %s88, %s104
      %p106 = scmp.eq.s32.totalorder %s14, 0
      %p107 = por %p105, %p106
      %p108 = scmp.le.s32.totalorder 1, %s8
      %p109 = scmp.lt.s32.totalorder %s8, 7
      %p110 = pnand %p108, %p109
      %p111 = pneg %p110
      // Predicated region
      $region9: #{buir_nb_forward.7} parent=5 // pred_check
        _
      $region10: #{buir_nb_forward.7} parent=5 // pred_check_branch
        %113 = sbr.rel (%p110) target = $region12
      $region11: #{buir_nb_forward.7} parent=5 // pred_region
        %s114 = ssub.s32 %s8, 1
      $region12: #{buir_nb_forward.7} parent=5 // pred_fallthru
        _
      %p115 = scmp.lt.s32.totalorder %s8, 6
      // Predicated region
      $region13: #{buir_nb_forward.7} parent=5 // pred_check
        %p116 = pneg %p115
      $region14: #{buir_nb_forward.7} parent=5 // pred_check_branch
        %118 = sbr.rel (%p116) target = $region16
      $region15: #{buir_nb_forward.7} parent=5 // pred_region
        // Predicated region
        $region17: #{buir_nb_forward.7} parent=15 // pred_check
          %p119 = pneg %p42
        $region18: #{buir_nb_forward.7} parent=15 // pred_check_branch
          %121 = sbr.rel (%p119) target = $region20
        $region19: #{buir_nb_forward.7} parent=15 // pred_region
          %s122 = sand.u32 %s32, 1
          %s123 = sand.u32 %s32, 1
          %s124 = smul.addr %s123, 128
          %s125 = scalar_lea.vmem [#allocation3], %s124
          %s126 = smul.u32 16, %s15
          %s127 = smul.addr %s126, 3
          %s128 = sadd.s32 %s16, %s127
          %s129 = smul.addr %s128, 8
          %s130 = scalar_lea.vmem %s0, %s129
          // Predicated region
          $region21: #{buir_nb_forward.7} parent=19 // pred_check
            _
          $region22: #{buir_nb_forward.7} parent=19 // pred_check_branch
            %132 = sbr.rel (0) target = $region24
          $region23: #{buir_nb_forward.7} parent=19 // pred_region
            // Predicated region
            $region25: #{buir_nb_forward.7} parent=23 // pred_check
              _
            $region26: #{buir_nb_forward.7} parent=23 // pred_check_branch
              %134 = sbr.rel (0) target = $region28
            $region27: #{buir_nb_forward.7} parent=23 // pred_region
              // Predicated region
              $region40: #{buir_nb_forward.7} parent=27 // pred_check
                _
              $region41: #{buir_nb_forward.7} parent=27 // pred_check_branch
                %179 = sbr.rel (0) target = $region43
              $region42: #{buir_nb_forward.7} parent=27 // pred_region
                loop: start=0, step=1, limit=1
                $region44: #{buir_nb_forward.7} parent=42 // loop_pre_header
                  _
                $region45: #{buir_nb_forward.7} parent=42 // loop_header
                  %s181 = sphi 0, %s185
                  %p182 = scmp.ge.s32.totalorder %s181, 1
                  %s186 = sphi %s130, %s130
                  %s187 = sphi %s125, %s125
                $region46: #{buir_nb_forward.7} parent=42 // loop_header_branch
                  %184 = sbr.rel (%p182) target = $region50
                $region47: #{buir_nb_forward.7} parent=42 // loop_body
                  %v188 = vld [vmem:[%s186] sm:$0xff]
                  %189 = vst [vmem:[%s187] sm:$0xff] %v188
                  %v190 = vld [vmem:[%s186 + $0x18] sm:$0xff]
                  %191 = vst [vmem:[%s187 + $0x8] sm:$0xff] %v190
                  %v192 = vld [vmem:[%s186 + $0x30] sm:$0xff]
                  %193 = vst [vmem:[%s187 + $0x10] sm:$0xff] %v192
                  %v194 = vld [vmem:[%s186 + $0x48] sm:$0xff]
                  %195 = vst [vmem:[%s187 + $0x18] sm:$0xff] %v194
                  %v196 = vld [vmem:[%s186 + $0x60] sm:$0xff]
                  %197 = vst [vmem:[%s187 + $0x20] sm:$0xff] %v196
                  %v198 = vld [vmem:[%s186 + $0x78] sm:$0xff]
                  %199 = vst [vmem:[%s187 + $0x28] sm:$0xff] %v198
                  %v200 = vld [vmem:[%s186 + $0x90] sm:$0xff]
                  %201 = vst [vmem:[%s187 + $0x30] sm:$0xff] %v200
                  %v202 = vld [vmem:[%s186 + $0xa8] sm:$0xff]
                  %203 = vst [vmem:[%s187 + $0x38] sm:$0xff] %v202
                  %v204 = vld [vmem:[%s186 + $0xc0] sm:$0xff]
                  %205 = vst [vmem:[%s187 + $0x40] sm:$0xff] %v204
                  %v206 = vld [vmem:[%s186 + $0xd8] sm:$0xff]
                  %207 = vst [vmem:[%s187 + $0x48] sm:$0xff] %v206
                  %v208 = vld [vmem:[%s186 + $0xf0] sm:$0xff]
                  %209 = vst [vmem:[%s187 + $0x50] sm:$0xff] %v208
                  %v210 = vld [vmem:[%s186 + $0x108] sm:$0xff]
                  %211 = vst [vmem:[%s187 + $0x58] sm:$0xff] %v210
                  %v212 = vld [vmem:[%s186 + $0x120] sm:$0xff]
                  %213 = vst [vmem:[%s187 + $0x60] sm:$0xff] %v212
                  %v214 = vld [vmem:[%s186 + $0x138] sm:$0xff]
                  %215 = vst [vmem:[%s187 + $0x68] sm:$0xff] %v214
                  %v216 = vld [vmem:[%s186 + $0x150] sm:$0xff]
                  %217 = vst [vmem:[%s187 + $0x70] sm:$0xff] %v216
                  %v218 = vld [vmem:[%s186 + $0x168] sm:$0xff]
                  %219 = vst [vmem:[%s187 + $0x78] sm:$0xff] %v218
                $region48: #{buir_nb_forward.7} parent=42 // loop_footer
                  %s185 = sadd.s32 1, %s181
                $region49: #{buir_nb_forward.7} parent=42 // loop_footer_branch
                  %180 = sbr.rel target = $region45
                $region50: #{buir_nb_forward.7} parent=42 // loop_exit
                  _
              $region43: #{buir_nb_forward.7} parent=27 // pred_fallthru
                _
              // Predicated region
              $region51: #{buir_nb_forward.7} parent=27 // pred_check
                _
              $region52: #{buir_nb_forward.7} parent=27 // pred_check_branch
                %221 = sbr.rel target = $region54
              $region53: #{buir_nb_forward.7} parent=27 // pred_region
                _
              $region54: #{buir_nb_forward.7} parent=27 // pred_fallthru
                _
            $region28: #{buir_nb_forward.7} parent=23 // pred_fallthru
              _
            // Predicated region
            $region29: #{buir_nb_forward.7} parent=23 // pred_check
              _
            $region30: #{buir_nb_forward.7} parent=23 // pred_check_branch
              %136 = sbr.rel target = $region32
            $region31: #{buir_nb_forward.7} parent=23 // pred_region
              loop: start=0, step=1, limit=1
              $region33: #{buir_nb_forward.7} parent=31 // loop_pre_header
                _
              $region34: #{buir_nb_forward.7} parent=31 // loop_header
                %s139 = sphi 0, %s143
                %p140 = scmp.ge.s32.totalorder %s139, 1
                %s144 = sphi %s130, %s130
                %s145 = sphi %s125, %s125
              $region35: #{buir_nb_forward.7} parent=31 // loop_header_branch
                %142 = sbr.rel (%p140) target = $region39
              $region36: #{buir_nb_forward.7} parent=31 // loop_body
                %v146 = vld [vmem:[%s144] sm:$0xff]
                %147 = vst [vmem:[%s145] sm:$0xff] %v146
                %v148 = vld [vmem:[%s144 + $0x18] sm:$0xff]
                %149 = vst [vmem:[%s145 + $0x8] sm:$0xff] %v148
                %v150 = vld [vmem:[%s144 + $0x30] sm:$0xff]
                %151 = vst [vmem:[%s145 + $0x10] sm:$0xff] %v150
                %v152 = vld [vmem:[%s144 + $0x48] sm:$0xff]
                %153 = vst [vmem:[%s145 + $0x18] sm:$0xff] %v152
                %v154 = vld [vmem:[%s144 + $0x60] sm:$0xff]
                %155 = vst [vmem:[%s145 + $0x20] sm:$0xff] %v154
                %v156 = vld [vmem:[%s144 + $0x78] sm:$0xff]
                %157 = vst [vmem:[%s145 + $0x28] sm:$0xff] %v156
                %v158 = vld [vmem:[%s144 + $0x90] sm:$0xff]
                %159 = vst [vmem:[%s145 + $0x30] sm:$0xff] %v158
                %v160 = vld [vmem:[%s144 + $0xa8] sm:$0xff]
                %161 = vst [vmem:[%s145 + $0x38] sm:$0xff] %v160
                %v162 = vld [vmem:[%s144 + $0xc0] sm:$0xff]
                %163 = vst [vmem:[%s145 + $0x40] sm:$0xff] %v162
                %v164 = vld [vmem:[%s144 + $0xd8] sm:$0xff]
                %165 = vst [vmem:[%s145 + $0x48] sm:$0xff] %v164
                %v166 = vld [vmem:[%s144 + $0xf0] sm:$0xff]
                %167 = vst [vmem:[%s145 + $0x50] sm:$0xff] %v166
                %v168 = vld [vmem:[%s144 + $0x108] sm:$0xff]
                %169 = vst [vmem:[%s145 + $0x58] sm:$0xff] %v168
                %v170 = vld [vmem:[%s144 + $0x120] sm:$0xff]
                %171 = vst [vmem:[%s145 + $0x60] sm:$0xff] %v170
                %v172 = vld [vmem:[%s144 + $0x138] sm:$0xff]
                %173 = vst [vmem:[%s145 + $0x68] sm:$0xff] %v172
                %v174 = vld [vmem:[%s144 + $0x150] sm:$0xff]
                %175 = vst [vmem:[%s145 + $0x70] sm:$0xff] %v174
                %v176 = vld [vmem:[%s144 + $0x168] sm:$0xff]
                %177 = vst [vmem:[%s145 + $0x78] sm:$0xff] %v176
              $region37: #{buir_nb_forward.7} parent=31 // loop_footer
                %s143 = sadd.s32 1, %s139
              $region38: #{buir_nb_forward.7} parent=31 // loop_footer_branch
                %138 = sbr.rel target = $region34
              $region39: #{buir_nb_forward.7} parent=31 // loop_exit
                _
            $region32: #{buir_nb_forward.7} parent=23 // pred_fallthru
              _
          $region24: #{buir_nb_forward.7} parent=19 // pred_fallthru
            _
          %222 = vnop
        $region20: #{buir_nb_forward.7} parent=15 // pred_fallthru
          _
        // Predicated region
        $region55: #{buir_nb_forward.7} parent=15 // pred_check
          %p223 = pneg %p68
        $region56: #{buir_nb_forward.7} parent=15 // pred_check_branch
          %225 = sbr.rel (%p223) target = $region58
        $region57: #{buir_nb_forward.7} parent=15 // pred_region
          %s226 = smul.u32 16, %s16
          %p227 = scmp.lt.s32.totalorder %s226, 47
          %s228 = scalar_select %p227, %s226, 47
          %s229 = smul.addr %s228, 8
          %s230 = scalar_lea.vmem %s1, %s229
          %s231 = smul.u32 16, %s16
        $region58: #{buir_nb_forward.7} parent=15 // pred_fallthru
          _
      $region16: #{buir_nb_forward.7} parent=5 // pred_fallthru
        _
      %p232 = scmp.le.s32.totalorder 1, %s8
      %p233 = scmp.lt.s32.totalorder %s8, 7
      %p234 = pnand %p232, %p233
      %p235 = pneg %p234
      // Predicated region
      $region59: #{buir_nb_forward.7} parent=5 // pred_check
        _
      $region60: #{buir_nb_forward.7} parent=5 // pred_check_branch
        %237 = sbr.rel (%p234) target = $region62
      $region61: #{buir_nb_forward.7} parent=5 // pred_region
        %s238 = ssub.s32 %s8, 1
        %s239 = sand.u32 %s35, 1
        %s240 = sand.u32 %s35, 1
        %s241 = smul.addr %s240, 128
        %s242 = scalar_lea.vmem [#allocation3], %s241
        // Predicated region
        $region63: #{buir_nb_forward.7} parent=61 // pred_check
          %p243 = pneg %p48
        $region64: #{buir_nb_forward.7} parent=61 // pred_check_branch
          %245 = sbr.rel (%p243) target = $region66
        $region65: #{buir_nb_forward.7} parent=61 // pred_region
          _
        $region66: #{buir_nb_forward.7} parent=61 // pred_fallthru
          _
        %s246 = sand.u32 %s35, 1
        %s247 = sand.u32 %s35, 1
        %s248 = smul.addr %s247, 128
        %s249 = scalar_lea.vmem [#allocation3], %s248
        %p250 = pneg %p48
        %p251 = pneg %p45
        %s252 = smul.u32 16, %s18
        %p253 = scmp.lt.s32.totalorder %s252, 47
        %s254 = scalar_select %p253, %s252, 47
        %s255 = smul.addr %s254, 8
        %s256 = scalar_lea.vmem %s1, %s255
        %p257 = pneg %p74
        %p258 = pneg %p71
        %p259 = pneg %p100
        %p260 = pneg %p97
        %s261 = smul.u32 16, %s17
        %p262 = scmp.lt.s32.totalorder %s261, 31
        %s263 = scalar_select %p262, %s261, 31
        %s264 = smul.addr %s263, 8
        %s265 = scalar_lea.vmem %s2, %s264
        %s266 = smul.u32 16, %s17
        %s267 = smul.u32 16, %s18
        %p268 = scmp.lt.s32.totalorder %s267, 47
        %s269 = scalar_select %p268, %s267, 47
        %s270 = smul.addr %s269, 8
        %s271 = scalar_lea.vmem %s1, %s270
        %s272 = smul.u32 16, %s18
        %s273 = smul.u32 16, %s17
        %p274 = scmp.lt.s32.totalorder %s273, 31
        %s275 = scalar_select %p274, %s273, 31
        %s276 = smul.addr %s275, 8
        %s277 = scalar_lea.vmem %s2, %s276
        %s278 = smul.u32 16, %s17
        %p279 = scmp.eq.s32.totalorder %s18, 0
        // Predicated region
        $region67: #{buir_nb_forward.7} parent=61 // pred_check
          %p280 = pneg %p279
        $region68: #{buir_nb_forward.7} parent=61 // pred_check_branch
          %282 = sbr.rel (%p280) target = $region70
        $region69: #{buir_nb_forward.7} parent=61 // pred_region
          %283 = vst [vmem:[#allocation2] sm:$0xff] 0.0
          %284 = vst [vmem:[#allocation2 + $0x8] sm:$0xff] 0.0
          %285 = vst [vmem:[#allocation2 + $0x10] sm:$0xff] 0.0
          %286 = vst [vmem:[#allocation2 + $0x18] sm:$0xff] 0.0
          %287 = vst [vmem:[#allocation2 + $0x20] sm:$0xff] 0.0
          %288 = vst [vmem:[#allocation2 + $0x28] sm:$0xff] 0.0
          %289 = vst [vmem:[#allocation2 + $0x30] sm:$0xff] 0.0
          %290 = vst [vmem:[#allocation2 + $0x38] sm:$0xff] 0.0
          %291 = vst [vmem:[#allocation2 + $0x40] sm:$0xff] 0.0
          %292 = vst [vmem:[#allocation2 + $0x48] sm:$0xff] 0.0
          %293 = vst [vmem:[#allocation2 + $0x50] sm:$0xff] 0.0
          %294 = vst [vmem:[#allocation2 + $0x58] sm:$0xff] 0.0
          %295 = vst [vmem:[#allocation2 + $0x60] sm:$0xff] 0.0
          %296 = vst [vmem:[#allocation2 + $0x68] sm:$0xff] 0.0
          %297 = vst [vmem:[#allocation2 + $0x70] sm:$0xff] 0.0
          %298 = vst [vmem:[#allocation2 + $0x78] sm:$0xff] 0.0
        $region70: #{buir_nb_forward.7} parent=61 // pred_fallthru
          _
        %v299 = vld [vmem:[#allocation2] sm:$0xff]
        %v300 = vld [vmem:[#allocation2 + $0x8] sm:$0xff]
        %v301 = vld [vmem:[#allocation2 + $0x10] sm:$0xff]
        %v302 = vld [vmem:[#allocation2 + $0x18] sm:$0xff]
        %v303 = vld [vmem:[#allocation2 + $0x20] sm:$0xff]
        %v304 = vld [vmem:[#allocation2 + $0x28] sm:$0xff]
        %v305 = vld [vmem:[#allocation2 + $0x30] sm:$0xff]
        %v306 = vld [vmem:[#allocation2 + $0x38] sm:$0xff]
        %v307 = vld [vmem:[#allocation2 + $0x40] sm:$0xff]
        %v308 = vld [vmem:[#allocation2 + $0x48] sm:$0xff]
        %v309 = vld [vmem:[#allocation2 + $0x50] sm:$0xff]
        %v310 = vld [vmem:[#allocation2 + $0x58] sm:$0xff]
        %v311 = vld [vmem:[#allocation2 + $0x60] sm:$0xff]
        %v312 = vld [vmem:[#allocation2 + $0x68] sm:$0xff]
        %v313 = vld [vmem:[#allocation2 + $0x70] sm:$0xff]
        %v314 = vld [vmem:[#allocation2 + $0x78] sm:$0xff]
        %v315 = vld [vmem:[%s242] sm:$0xff]
        %v316 = vld [vmem:[%s242 + $0x8] sm:$0xff]
        %v317 = vld [vmem:[%s242 + $0x10] sm:$0xff]
        %v318 = vld [vmem:[%s242 + $0x18] sm:$0xff]
        %v319 = vld [vmem:[%s242 + $0x20] sm:$0xff]
        %v320 = vld [vmem:[%s242 + $0x28] sm:$0xff]
        %v321 = vld [vmem:[%s242 + $0x30] sm:$0xff]
        %v322 = vld [vmem:[%s242 + $0x38] sm:$0xff]
        %v323 = vld [vmem:[%s242 + $0x40] sm:$0xff]
        %v324 = vld [vmem:[%s242 + $0x48] sm:$0xff]
        %v325 = vld [vmem:[%s242 + $0x50] sm:$0xff]
        %v326 = vld [vmem:[%s242 + $0x58] sm:$0xff]
        %v327 = vld [vmem:[%s242 + $0x60] sm:$0xff]
        %v328 = vld [vmem:[%s242 + $0x68] sm:$0xff]
        %v329 = vld [vmem:[%s242 + $0x70] sm:$0xff]
        %v330 = vld [vmem:[%s242 + $0x78] sm:$0xff]
        %v331 = vld [vmem:[%s271] sm:$0xff]
        %v332 = vld [vmem:[%s271 + $0x8] sm:$0xff]
        %v333 = vld [vmem:[%s271 + $0x10] sm:$0xff]
        %v334 = vld [vmem:[%s271 + $0x18] sm:$0xff]
        %v335 = vld [vmem:[%s271 + $0x20] sm:$0xff]
        %v336 = vld [vmem:[%s271 + $0x28] sm:$0xff]
        %v337 = vld [vmem:[%s271 + $0x30] sm:$0xff]
        %v338 = vld [vmem:[%s271 + $0x38] sm:$0xff]
        %v339 = vld [vmem:[%s271 + $0x40] sm:$0xff]
        %v340 = vld [vmem:[%s271 + $0x48] sm:$0xff]
        %v341 = vld [vmem:[%s271 + $0x50] sm:$0xff]
        %v342 = vld [vmem:[%s271 + $0x58] sm:$0xff]
        %v343 = vld [vmem:[%s271 + $0x60] sm:$0xff]
        %v344 = vld [vmem:[%s271 + $0x68] sm:$0xff]
        %v345 = vld [vmem:[%s271 + $0x70] sm:$0xff]
        %v346 = vld [vmem:[%s271 + $0x78] sm:$0xff]
        %347 = vmatprep.subr.mxu0 0.0
        %348 = vmatpush1.msra.mxu0 %v331
        %349 = vmatprep.subr.mxu0 0.0
        %350 = vmatpush1.msra.mxu0 %v332
        %351 = vmatprep.subr.mxu0 0.0
        %352 = vmatpush1.msra.mxu0 %v333
        %353 = vmatprep.subr.mxu0 0.0
        %354 = vmatpush1.msra.mxu0 %v334
        %355 = vmatprep.subr.mxu0 0.0
        %356 = vmatpush1.msra.mxu0 %v335
        %357 = vmatprep.subr.mxu0 0.0
        %358 = vmatpush1.msra.mxu0 %v336
        %359 = vmatprep.subr.mxu0 0.0
        %360 = vmatpush1.msra.mxu0 %v337
        %361 = vmatprep.subr.mxu0 0.0
        %362 = vmatpush1.msra.mxu0 %v338
        %363 = vmatprep.subr.mxu0 0.0
        %364 = vmatpush1.msra.mxu0 %v339
        %365 = vmatprep.subr.mxu0 0.0
        %366 = vmatpush1.msra.mxu0 %v340
        %367 = vmatprep.subr.mxu0 0.0
        %368 = vmatpush1.msra.mxu0 %v341
        %369 = vmatprep.subr.mxu0 0.0
        %370 = vmatpush1.msra.mxu0 %v342
        %371 = vmatprep.subr.mxu0 0.0
        %372 = vmatpush1.msra.mxu0 %v343
        %373 = vmatprep.subr.mxu0 0.0
        %374 = vmatpush1.msra.mxu0 %v344
        %375 = vmatprep.subr.mxu0 0.0
        %376 = vmatpush1.msra.mxu0 %v345
        %377 = vmatprep.subr.mxu0 0.0
        %378 = vmatpush1.msra.mxu0 %v346
        %379 = vmatprep.subr.mxu0 0.0
        %380 = vmatpush1.msra.mxu0 0.0
        %381 = vmatprep.subr.mxu0 0.0
        %382 = vmatpush1.msra.mxu0 0.0
        %383 = vmatprep.subr.mxu0 0.0
        %384 = vmatpush1.msra.mxu0 0.0
        %385 = vmatprep.subr.mxu0 0.0
        %386 = vmatpush1.msra.mxu0 0.0
        %387 = vmatprep.subr.mxu0 0.0
        %388 = vmatpush1.msra.mxu0 0.0
        %389 = vmatprep.subr.mxu0 0.0
        %390 = vmatpush1.msra.mxu0 0.0
        %391 = vmatprep.subr.mxu0 0.0
        %392 = vmatpush1.msra.mxu0 0.0
        %393 = vmatprep.subr.mxu0 0.0
        %394 = vmatpush1.msra.mxu0 0.0
        %395 = vmatprep.subr.mxu0 0.0
        %396 = vmatpush1.msra.mxu0 0.0
        %397 = vmatprep.subr.mxu0 0.0
        %398 = vmatpush1.msra.mxu0 0.0
        %399 = vmatprep.subr.mxu0 0.0
        %400 = vmatpush1.msra.mxu0 0.0
        %401 = vmatprep.subr.mxu0 0.0
        %402 = vmatpush1.msra.mxu0 0.0
        %403 = vmatprep.subr.mxu0 0.0
        %404 = vmatpush1.msra.mxu0 0.0
        %405 = vmatprep.subr.mxu0 0.0
        %406 = vmatpush1.msra.mxu0 0.0
        %407 = vmatprep.subr.mxu0 0.0
        %408 = vmatpush1.msra.mxu0 0.0
        %409 = vmatprep.subr.mxu0 0.0
        %410 = vmatpush1.msra.mxu0 0.0
        %411 = vmatprep.mubr.f32.mxu0 0.0
        %412 = vmatmul.mubr.f32.gmra.mrb[0].mxu0 %v315
        %v413 = vpop.f32.mrb[0].mxu0
        %v414 = vadd.f32 0.0, %v413
        %v415 = vpop.f32.mrb[0].mxu0
        %416 = vmatprep.mubr.f32.mxu0 0.0
        %417 = vmatmul.mubr.f32.gmra.mrb[0].mxu0 %v316
        %v418 = vpop.f32.mrb[0].mxu0
        %v419 = vadd.f32 0.0, %v418
        %v420 = vpop.f32.mrb[0].mxu0
        %421 = vmatprep.mubr.f32.mxu0 0.0
        %422 = vmatmul.mubr.f32.gmra.mrb[0].mxu0 %v317
        %v423 = vpop.f32.mrb[0].mxu0
        %v424 = vadd.f32 0.0, %v423
        %v425 = vpop.f32.mrb[0].mxu0
        %426 = vmatprep.mubr.f32.mxu0 0.0
        %427 = vmatmul.mubr.f32.gmra.mrb[0].mxu0 %v318
        %v428 = vpop.f32.mrb[0].mxu0
        %v429 = vadd.f32 0.0, %v428
        %v430 = vpop.f32.mrb[0].mxu0
        %431 = vmatprep.mubr.f32.mxu0 0.0
        %432 = vmatmul.mubr.f32.gmra.mrb[0].mxu0 %v319
        %v433 = vpop.f32.mrb[0].mxu0
        %v434 = vadd.f32 0.0, %v433
        %v435 = vpop.f32.mrb[0].mxu0
        %436 = vmatprep.mubr.f32.mxu0 0.0
        %437 = vmatmul.mubr.f32.gmra.mrb[0].mxu0 %v320
        %v438 = vpop.f32.mrb[0].mxu0
        %v439 = vadd.f32 0.0, %v438
        %v440 = vpop.f32.mrb[0].mxu0
        %441 = vmatprep.mubr.f32.mxu0 0.0
        %442 = vmatmul.mubr.f32.gmra.mrb[0].mxu0 %v321
        %v443 = vpop.f32.mrb[0].mxu0
        %v444 = vadd.f32 0.0, %v443
        %v445 = vpop.f32.mrb[0].mxu0
        %446 = vmatprep.mubr.f32.mxu0 0.0
        %447 = vmatmul.mubr.f32.gmra.mrb[0].mxu0 %v322
        %v448 = vpop.f32.mrb[0].mxu0
        %v449 = vadd.f32 0.0, %v448
        %v450 = vpop.f32.mrb[0].mxu0
        %451 = vmatprep.mubr.f32.mxu0 0.0
        %452 = vmatmul.mubr.f32.gmra.mrb[0].mxu0 %v323
        %v453 = vpop.f32.mrb[0].mxu0
        %v454 = vadd.f32 0.0, %v453
        %v455 = vpop.f32.mrb[0].mxu0
        %456 = vmatprep.mubr.f32.mxu0 0.0
        %457 = vmatmul.mubr.f32.gmra.mrb[0].mxu0 %v324
        %v458 = vpop.f32.mrb[0].mxu0
        %v459 = vadd.f32 0.0, %v458
        %v460 = vpop.f32.mrb[0].mxu0
        %461 = vmatprep.mubr.f32.mxu0 0.0
        %462 = vmatmul.mubr.f32.gmra.mrb[0].mxu0 %v325
        %v463 = vpop.f32.mrb[0].mxu0
        %v464 = vadd.f32 0.0, %v463
        %v465 = vpop.f32.mrb[0].mxu0
        %466 = vmatprep.mubr.f32.mxu0 0.0
        %467 = vmatmul.mubr.f32.gmra.mrb[0].mxu0 %v326
        %v468 = vpop.f32.mrb[0].mxu0
        %v469 = vadd.f32 0.0, %v468
        %v470 = vpop.f32.mrb[0].mxu0
        %471 = vmatprep.mubr.f32.mxu0 0.0
        %472 = vmatmul.mubr.f32.gmra.mrb[0].mxu0 %v327
        %v473 = vpop.f32.mrb[0].mxu0
        %v474 = vadd.f32 0.0, %v473
        %v475 = vpop.f32.mrb[0].mxu0
        %476 = vmatprep.mubr.f32.mxu0 0.0
        %477 = vmatmul.mubr.f32.gmra.mrb[0].mxu0 %v328
        %v478 = vpop.f32.mrb[0].mxu0
        %v479 = vadd.f32 0.0, %v478
        %v480 = vpop.f32.mrb[0].mxu0
        %481 = vmatprep.mubr.f32.mxu0 0.0
        %482 = vmatmul.mubr.f32.gmra.mrb[0].mxu0 %v329
        %v483 = vpop.f32.mrb[0].mxu0
        %v484 = vadd.f32 0.0, %v483
        %v485 = vpop.f32.mrb[0].mxu0
        %486 = vmatprep.mubr.f32.mxu0 0.0
        %487 = vmatmul.mubr.f32.gmra.mrb[0].mxu0 %v330
        %v488 = vpop.f32.mrb[0].mxu0
        %v489 = vadd.f32 0.0, %v488
        %v490 = vpop.f32.mrb[0].mxu0
        %491 = vdwg.mxu0
        %v492 = vadd.f32 %v299, %v414
        %v493 = vadd.f32 %v300, %v419
        %v494 = vadd.f32 %v301, %v424
        %v495 = vadd.f32 %v302, %v429
        %v496 = vadd.f32 %v303, %v434
        %v497 = vadd.f32 %v304, %v439
        %v498 = vadd.f32 %v305, %v444
        %v499 = vadd.f32 %v306, %v449
        %v500 = vadd.f32 %v307, %v454
        %v501 = vadd.f32 %v308, %v459
        %v502 = vadd.f32 %v309, %v464
        %v503 = vadd.f32 %v310, %v469
        %v504 = vadd.f32 %v311, %v474
        %v505 = vadd.f32 %v312, %v479
        %v506 = vadd.f32 %v313, %v484
        %v507 = vadd.f32 %v314, %v489
        %508 = vst [vmem:[#allocation2] sm:$0xff] %v492
        %509 = vst [vmem:[#allocation2 + $0x8] sm:$0xff] %v493
        %510 = vst [vmem:[#allocation2 + $0x10] sm:$0xff] %v494
        %511 = vst [vmem:[#allocation2 + $0x18] sm:$0xff] %v495
        %512 = vst [vmem:[#allocation2 + $0x20] sm:$0xff] %v496
        %513 = vst [vmem:[#allocation2 + $0x28] sm:$0xff] %v497
        %514 = vst [vmem:[#allocation2 + $0x30] sm:$0xff] %v498
        %515 = vst [vmem:[#allocation2 + $0x38] sm:$0xff] %v499
        %516 = vst [vmem:[#allocation2 + $0x40] sm:$0xff] %v500
        %517 = vst [vmem:[#allocation2 + $0x48] sm:$0xff] %v501
        %518 = vst [vmem:[#allocation2 + $0x50] sm:$0xff] %v502
        %519 = vst [vmem:[#allocation2 + $0x58] sm:$0xff] %v503
        %520 = vst [vmem:[#allocation2 + $0x60] sm:$0xff] %v504
        %521 = vst [vmem:[#allocation2 + $0x68] sm:$0xff] %v505
        %522 = vst [vmem:[#allocation2 + $0x70] sm:$0xff] %v506
        %523 = vst [vmem:[#allocation2 + $0x78] sm:$0xff] %v507
        %p524 = scmp.eq.s32.totalorder %s18, 2
        // Predicated region
        $region71: #{buir_nb_forward.7} parent=61 // pred_check
          %p525 = pneg %p524
        $region72: #{buir_nb_forward.7} parent=61 // pred_check_branch
          %527 = sbr.rel (%p525) target = $region74
        $region73: #{buir_nb_forward.7} parent=61 // pred_region
          %v528 = vld [vmem:[#allocation2] sm:$0xff]
          %v529 = vld [vmem:[#allocation2 + $0x8] sm:$0xff]
          %v530 = vld [vmem:[#allocation2 + $0x10] sm:$0xff]
          %v531 = vld [vmem:[#allocation2 + $0x18] sm:$0xff]
          %v532 = vld [vmem:[#allocation2 + $0x20] sm:$0xff]
          %v533 = vld [vmem:[#allocation2 + $0x28] sm:$0xff]
          %v534 = vld [vmem:[#allocation2 + $0x30] sm:$0xff]
          %v535 = vld [vmem:[#allocation2 + $0x38] sm:$0xff]
          %v536 = vld [vmem:[#allocation2 + $0x40] sm:$0xff]
          %v537 = vld [vmem:[#allocation2 + $0x48] sm:$0xff]
          %v538 = vld [vmem:[#allocation2 + $0x50] sm:$0xff]
          %v539 = vld [vmem:[#allocation2 + $0x58] sm:$0xff]
          %v540 = vld [vmem:[#allocation2 + $0x60] sm:$0xff]
          %v541 = vld [vmem:[#allocation2 + $0x68] sm:$0xff]
          %v542 = vld [vmem:[#allocation2 + $0x70] sm:$0xff]
          %v543 = vld [vmem:[#allocation2 + $0x78] sm:$0xff]
          %544 = vst [vmem:[%s277] sm:$0xff] %v528
          %545 = vst [vmem:[%s277 + $0x8] sm:$0xff] %v529
          %546 = vst [vmem:[%s277 + $0x10] sm:$0xff] %v530
          %547 = vst [vmem:[%s277 + $0x18] sm:$0xff] %v531
          %548 = vst [vmem:[%s277 + $0x20] sm:$0xff] %v532
          %549 = vst [vmem:[%s277 + $0x28] sm:$0xff] %v533
          %550 = vst [vmem:[%s277 + $0x30] sm:$0xff] %v534
          %551 = vst [vmem:[%s277 + $0x38] sm:$0xff] %v535
          %552 = vst [vmem:[%s277 + $0x40] sm:$0xff] %v536
          %553 = vst [vmem:[%s277 + $0x48] sm:$0xff] %v537
          %554 = vst [vmem:[%s277 + $0x50] sm:$0xff] %v538
          %555 = vst [vmem:[%s277 + $0x58] sm:$0xff] %v539
          %556 = vst [vmem:[%s277 + $0x60] sm:$0xff] %v540
          %557 = vst [vmem:[%s277 + $0x68] sm:$0xff] %v541
          %558 = vst [vmem:[%s277 + $0x70] sm:$0xff] %v542
          %559 = vst [vmem:[%s277 + $0x78] sm:$0xff] %v543
        $region74: #{buir_nb_forward.7} parent=61 // pred_fallthru
          _
        %s560 = smul.u32 16, %s17
        %p561 = scmp.lt.s32.totalorder %s560, 31
        %s562 = scalar_select %p561, %s560, 31
        %s563 = smul.addr %s562, 8
        %s564 = scalar_lea.vmem %s2, %s563
        // Predicated region
        $region75: #{buir_nb_forward.7} parent=61 // pred_check
          %p565 = pneg %p97
        $region76: #{buir_nb_forward.7} parent=61 // pred_check_branch
          %567 = sbr.rel (%p565) target = $region78
        $region77: #{buir_nb_forward.7} parent=61 // pred_region
          %s568 = smul.u32 16, %s17
        $region78: #{buir_nb_forward.7} parent=61 // pred_fallthru
          _
      $region62: #{buir_nb_forward.7} parent=5 // pred_fallthru
        _
      %p569 = scmp.le.s32.totalorder 2, %s8
      // Predicated region
      $region79: #{buir_nb_forward.7} parent=5 // pred_check
        %p570 = pneg %p569
      $region80: #{buir_nb_forward.7} parent=5 // pred_check_branch
        %572 = sbr.rel (%p570) target = $region82
      $region81: #{buir_nb_forward.7} parent=5 // pred_region
        %s573 = ssub.s32 %s8, 2
        // Predicated region
        $region83: #{buir_nb_forward.7} parent=81 // pred_check
          %p574 = pneg %p103
        $region84: #{buir_nb_forward.7} parent=81 // pred_check_branch
          %576 = sbr.rel (%p574) target = $region86
        $region85: #{buir_nb_forward.7} parent=81 // pred_region
          %s577 = smul.u32 16, %s19
          %p578 = scmp.lt.s32.totalorder %s577, 31
          %s579 = scalar_select %p578, %s577, 31
          %s580 = smul.addr %s579, 8
          %s581 = scalar_lea.vmem %s2, %s580
        $region86: #{buir_nb_forward.7} parent=81 // pred_fallthru
          _
      $region82: #{buir_nb_forward.7} parent=5 // pred_fallthru
        _
    $region6: #{buir_nb_forward.7} parent=1 // loop_footer
      %s12 = sadd.s32 1, %s8
    $region7: #{buir_nb_forward.7} parent=1 // loop_footer_branch
      %7 = sbr.rel target = $region3
    $region8: #{buir_nb_forward.7} parent=1 // loop_exit
      _

// kernel: buir_nb_forward.10
$region0: #{buir_nb_forward.10}
  #allocation0 [shape = 'u32[]', space=smem, size = 0x4, offset = 0x4, fixed_abs, tag = 'smem constant byte address 0x4 - core index']
  #allocation1 [shape = 'u32[144,128]{1,0:T(1,128)}', space=vmem, size = 0x12000, scoped, tag = 'internal scratch']
  #allocation2 [shape = 'f32[128,128]{1,0:T(8,128)}', space=vmem, size = 0x10000, scoped, tag = 'scratch operand']
  %s0 = inlined_call_operand.vmem [shape: f32[384,256], index: 0, kind: input, shape index: {}]
  %s1 = inlined_call_operand.vmem [shape: f32[256,128], index: 1, kind: input, shape index: {}]
  %s2 = inlined_call_operand.vmem [shape: f32[384,128], index: 2, kind: output, shape index: {}]
  %s3 = sld [smem:[#allocation0]]
  $region87: #{buir_nb_forward.10} parent=0
    _
  %s5 = ssub.s32 1, %s3
  %s6 = scalar_select 0, %s5, %s3
  $region1: #{buir_nb_forward.10} parent=0
    #allocation3 [shape = 'u8[131072]{0}', space=vmem, size = 0x20000, scoped, tag = 'input window, operand 0']
    loop: start=0, step=1, limit=8
    $region2: #{buir_nb_forward.10} parent=1 // loop_pre_header
      _
    $region3: #{buir_nb_forward.10} parent=1 // loop_header
      %s8 = sphi 0, %s12
      %p9 = scmp.ge.s32.totalorder %s8, 8
      %s15 = sphi 0, %s27
      %s16 = sphi 0, %s23
      %s17 = sphi 0, %s15
      %s18 = sphi 0, %s16
      %s19 = sphi 0, %s17
      %s20 = sphi 0, %s18
      %s32 = sphi 0, %s34
      %s35 = sphi 0, %s32
      %s36 = sphi 0, %s35
      %s52 = sphi 0, %s36
      %s58 = sphi 0, %s60
      %s61 = sphi 0, %s58
      %s62 = sphi 0, %s61
      %s78 = sphi 0, %s62
      %s84 = sphi 0, %s86
      %s87 = sphi 0, %s84
      %s88 = sphi 0, %s87
      %s104 = sphi 0, %s88
    $region4: #{buir_nb_forward.10} parent=1 // loop_header_branch
      %11 = sbr.rel (%p9) target = $region8
    $region5: #{buir_nb_forward.10} parent=1 // loop_body
      %s13 = ssub.s32 %s8, 1
      %s14 = ssub.s32 %s8, 2
      %s21 = sadd.s32 1, %s16
      %p22 = scmp.ge.s32.totalorder %s21, 2
      %s23 = scalar_select %p22, 0, %s21
      %s24 = sadd.s32 1, %s15
      %s25 = scalar_select %p22, %s24, %s15
      %p26 = scmp.ge.s32.totalorder %s25, 3
      %s27 = scalar_select %p26, 0, %s25
      %s28 = ssub.s32 %s15, %s27
      %s29 = ssub.s32 %s16, %s23
      %s30 = sor.u32 %s28, %s29
      %p31 = scmp.eq.s32.totalorder %s30, 0
      %s33 = sadd.s32 %s32, 1
      %s34 = scalar_select %p31, %s32, %s33
      %p37 = pneg %p31
      %p38 = scmp.eq.s32.totalorder %s8, 5
      %p39 = por %p37, %p38
      %p40 = scmp.ne.s32.totalorder %s32, %s35
      %p41 = scmp.eq.s32.totalorder %s8, 0
      %p42 = por %p40, %p41
      %p43 = scmp.ne.s32.totalorder %s32, %s35
      %p44 = scmp.eq.s32.totalorder %s13, 5
      %p45 = por %p43, %p44
      %p46 = scmp.ne.s32.totalorder %s35, %s36
      %p47 = scmp.eq.s32.totalorder %s13, 0
      %p48 = por %p46, %p47
      %p49 = scmp.ne.s32.totalorder %s35, %s36
      %p50 = scmp.eq.s32.totalorder %s14, 5
      %p51 = por %p49, %p50
      %p53 = scmp.ne.s32.totalorder %s36, %s52
      %p54 = scmp.eq.s32.totalorder %s14, 0
      %p55 = por %p53, %p54
      %s56 = ssub.s32 %s16, %s23
      %p57 = scmp.eq.s32.totalorder %s56, 0
      %s59 = sadd.s32 %s58, 1
      %s60 = scalar_select %p57, %s58, %s59
      %p63 = pneg %p57
      %p64 = scmp.eq.s32.totalorder %s8, 5
      %p65 = por %p63, %p64
      %p66 = scmp.ne.s32.totalorder %s58, %s61
      %p67 = scmp.eq.s32.totalorder %s8, 0
      %p68 = por %p66, %p67
      %p69 = scmp.ne.s32.totalorder %s58, %s61
      %p70 = scmp.eq.s32.totalorder %s13, 5
      %p71 = por %p69, %p70
      %p72 = scmp.ne.s32.totalorder %s61, %s62
      %p73 = scmp.eq.s32.totalorder %s13, 0
      %p74 = por %p72, %p73
      %p75 = scmp.ne.s32.totalorder %s61, %s62
      %p76 = scmp.eq.s32.totalorder %s14, 5
      %p77 = por %p75, %p76
      %p79 = scmp.ne.s32.totalorder %s62, %s78
      %p80 = scmp.eq.s32.totalorder %s14, 0
      %p81 = por %p79, %p80
      %s82 = ssub.s32 %s15, %s27
      %p83 = scmp.eq.s32.totalorder %s82, 0
      %s85 = sadd.s32 %s84, 1
      %s86 = scalar_select %p83, %s84, %s85
      %p89 = pneg %p83
      %p90 = scmp.eq.s32.totalorder %s8, 5
      %p91 = por %p89, %p90
      %p92 = scmp.ne.s32.totalorder %s84, %s87
      %p93 = scmp.eq.s32.totalorder %s8, 0
      %p94 = por %p92, %p93
      %p95 = scmp.ne.s32.totalorder %s84, %s87
      %p96 = scmp.eq.s32.totalorder %s13, 5
      %p97 = por %p95, %p96
      %p98 = scmp.ne.s32.totalorder %s87, %s88
      %p99 = scmp.eq.s32.totalorder %s13, 0
      %p100 = por %p98, %p99
      %p101 = scmp.ne.s32.totalorder %s87, %s88
      %p102 = scmp.eq.s32.totalorder %s14, 5
      %p103 = por %p101, %p102
      %p105 = scmp.ne.s32.totalorder %s88, %s104
      %p106 = scmp.eq.s32.totalorder %s14, 0
      %p107 = por %p105, %p106
      %p108 = scmp.le.s32.totalorder 1, %s8
      %p109 = scmp.lt.s32.totalorder %s8, 7
      %p110 = pnand %p108, %p109
      %p111 = pneg %p110
      // Predicated region
      $region9: #{buir_nb_forward.10} parent=5 // pred_check
        _
      $region10: #{buir_nb_forward.10} parent=5 // pred_check_branch
        %113 = sbr.rel (%p110) target = $region12
      $region11: #{buir_nb_forward.10} parent=5 // pred_region
        %s114 = ssub.s32 %s8, 1
      $region12: #{buir_nb_forward.10} parent=5 // pred_fallthru
        _
      %p115 = scmp.lt.s32.totalorder %s8, 6
      // Predicated region
      $region13: #{buir_nb_forward.10} parent=5 // pred_check
        %p116 = pneg %p115
      $region14: #{buir_nb_forward.10} parent=5 // pred_check_branch
        %118 = sbr.rel (%p116) target = $region16
      $region15: #{buir_nb_forward.10} parent=5 // pred_region
        // Predicated region
        $region17: #{buir_nb_forward.10} parent=15 // pred_check
          %p119 = pneg %p42
        $region18: #{buir_nb_forward.10} parent=15 // pred_check_branch
          %121 = sbr.rel (%p119) target = $region20
        $region19: #{buir_nb_forward.10} parent=15 // pred_region
          %s122 = sand.u32 %s32, 1
          %s123 = sand.u32 %s32, 1
          %s124 = smul.addr %s123, 128
          %s125 = scalar_lea.vmem [#allocation3], %s124
          %s126 = smul.u32 16, %s15
          %s127 = smul.addr %s126, 2
          %s128 = sadd.s32 %s16, %s127
          %s129 = smul.addr %s128, 8
          %s130 = scalar_lea.vmem %s0, %s129
          // Predicated region
          $region21: #{buir_nb_forward.10} parent=19 // pred_check
            _
          $region22: #{buir_nb_forward.10} parent=19 // pred_check_branch
            %132 = sbr.rel (0) target = $region24
          $region23: #{buir_nb_forward.10} parent=19 // pred_region
            // Predicated region
            $region25: #{buir_nb_forward.10} parent=23 // pred_check
              _
            $region26: #{buir_nb_forward.10} parent=23 // pred_check_branch
              %134 = sbr.rel (0) target = $region28
            $region27: #{buir_nb_forward.10} parent=23 // pred_region
              // Predicated region
              $region40: #{buir_nb_forward.10} parent=27 // pred_check
                _
              $region41: #{buir_nb_forward.10} parent=27 // pred_check_branch
                %179 = sbr.rel (0) target = $region43
              $region42: #{buir_nb_forward.10} parent=27 // pred_region
                loop: start=0, step=1, limit=1
                $region44: #{buir_nb_forward.10} parent=42 // loop_pre_header
                  _
                $region45: #{buir_nb_forward.10} parent=42 // loop_header
                  %s181 = sphi 0, %s185
                  %p182 = scmp.ge.s32.totalorder %s181, 1
                  %s186 = sphi %s130, %s130
                  %s187 = sphi %s125, %s125
                $region46: #{buir_nb_forward.10} parent=42 // loop_header_branch
                  %184 = sbr.rel (%p182) target = $region50
                $region47: #{buir_nb_forward.10} parent=42 // loop_body
                  %v188 = vld [vmem:[%s186] sm:$0xff]
                  %189 = vst [vmem:[%s187] sm:$0xff] %v188
                  %v190 = vld [vmem:[%s186 + $0x10] sm:$0xff]
                  %191 = vst [vmem:[%s187 + $0x8] sm:$0xff] %v190
                  %v192 = vld [vmem:[%s186 + $0x20] sm:$0xff]
                  %193 = vst [vmem:[%s187 + $0x10] sm:$0xff] %v192
                  %v194 = vld [vmem:[%s186 + $0x30] sm:$0xff]
                  %195 = vst [vmem:[%s187 + $0x18] sm:$0xff] %v194
                  %v196 = vld [vmem:[%s186 + $0x40] sm:$0xff]
                  %197 = vst [vmem:[%s187 + $0x20] sm:$0xff] %v196
                  %v198 = vld [vmem:[%s186 + $0x50] sm:$0xff]
                  %199 = vst [vmem:[%s187 + $0x28] sm:$0xff] %v198
                  %v200 = vld [vmem:[%s186 + $0x60] sm:$0xff]
                  %201 = vst [vmem:[%s187 + $0x30] sm:$0xff] %v200
                  %v202 = vld [vmem:[%s186 + $0x70] sm:$0xff]
                  %203 = vst [vmem:[%s187 + $0x38] sm:$0xff] %v202
                  %v204 = vld [vmem:[%s186 + $0x80] sm:$0xff]
                  %205 = vst [vmem:[%s187 + $0x40] sm:$0xff] %v204
                  %v206 = vld [vmem:[%s186 + $0x90] sm:$0xff]
                  %207 = vst [vmem:[%s187 + $0x48] sm:$0xff] %v206
                  %v208 = vld [vmem:[%s186 + $0xa0] sm:$0xff]
                  %209 = vst [vmem:[%s187 + $0x50] sm:$0xff] %v208
                  %v210 = vld [vmem:[%s186 + $0xb0] sm:$0xff]
                  %211 = vst [vmem:[%s187 + $0x58] sm:$0xff] %v210
                  %v212 = vld [vmem:[%s186 + $0xc0] sm:$0xff]
                  %213 = vst [vmem:[%s187 + $0x60] sm:$0xff] %v212
                  %v214 = vld [vmem:[%s186 + $0xd0] sm:$0xff]
                  %215 = vst [vmem:[%s187 + $0x68] sm:$0xff] %v214
                  %v216 = vld [vmem:[%s186 + $0xe0] sm:$0xff]
                  %217 = vst [vmem:[%s187 + $0x70] sm:$0xff] %v216
                  %v218 = vld [vmem:[%s186 + $0xf0] sm:$0xff]
                  %219 = vst [vmem:[%s187 + $0x78] sm:$0xff] %v218
                $region48: #{buir_nb_forward.10} parent=42 // loop_footer
                  %s185 = sadd.s32 1, %s181
                $region49: #{buir_nb_forward.10} parent=42 // loop_footer_branch
                  %180 = sbr.rel target = $region45
                $region50: #{buir_nb_forward.10} parent=42 // loop_exit
                  _
              $region43: #{buir_nb_forward.10} parent=27 // pred_fallthru
                _
              // Predicated region
              $region51: #{buir_nb_forward.10} parent=27 // pred_check
                _
              $region52: #{buir_nb_forward.10} parent=27 // pred_check_branch
                %221 = sbr.rel target = $region54
              $region53: #{buir_nb_forward.10} parent=27 // pred_region
                _
              $region54: #{buir_nb_forward.10} parent=27 // pred_fallthru
                _
            $region28: #{buir_nb_forward.10} parent=23 // pred_fallthru
              _
            // Predicated region
            $region29: #{buir_nb_forward.10} parent=23 // pred_check
              _
            $region30: #{buir_nb_forward.10} parent=23 // pred_check_branch
              %136 = sbr.rel target = $region32
            $region31: #{buir_nb_forward.10} parent=23 // pred_region
              loop: start=0, step=1, limit=1
              $region33: #{buir_nb_forward.10} parent=31 // loop_pre_header
                _
              $region34: #{buir_nb_forward.10} parent=31 // loop_header
                %s139 = sphi 0, %s143
                %p140 = scmp.ge.s32.totalorder %s139, 1
                %s144 = sphi %s130, %s130
                %s145 = sphi %s125, %s125
              $region35: #{buir_nb_forward.10} parent=31 // loop_header_branch
                %142 = sbr.rel (%p140) target = $region39
              $region36: #{buir_nb_forward.10} parent=31 // loop_body
                %v146 = vld [vmem:[%s144] sm:$0xff]
                %147 = vst [vmem:[%s145] sm:$0xff] %v146
                %v148 = vld [vmem:[%s144 + $0x10] sm:$0xff]
                %149 = vst [vmem:[%s145 + $0x8] sm:$0xff] %v148
                %v150 = vld [vmem:[%s144 + $0x20] sm:$0xff]
                %151 = vst [vmem:[%s145 + $0x10] sm:$0xff] %v150
                %v152 = vld [vmem:[%s144 + $0x30] sm:$0xff]
                %153 = vst [vmem:[%s145 + $0x18] sm:$0xff] %v152
                %v154 = vld [vmem:[%s144 + $0x40] sm:$0xff]
                %155 = vst [vmem:[%s145 + $0x20] sm:$0xff] %v154
                %v156 = vld [vmem:[%s144 + $0x50] sm:$0xff]
                %157 = vst [vmem:[%s145 + $0x28] sm:$0xff] %v156
                %v158 = vld [vmem:[%s144 + $0x60] sm:$0xff]
                %159 = vst [vmem:[%s145 + $0x30] sm:$0xff] %v158
                %v160 = vld [vmem:[%s144 + $0x70] sm:$0xff]
                %161 = vst [vmem:[%s145 + $0x38] sm:$0xff] %v160
                %v162 = vld [vmem:[%s144 + $0x80] sm:$0xff]
                %163 = vst [vmem:[%s145 + $0x40] sm:$0xff] %v162
                %v164 = vld [vmem:[%s144 + $0x90] sm:$0xff]
                %165 = vst [vmem:[%s145 + $0x48] sm:$0xff] %v164
                %v166 = vld [vmem:[%s144 + $0xa0] sm:$0xff]
                %167 = vst [vmem:[%s145 + $0x50] sm:$0xff] %v166
                %v168 = vld [vmem:[%s144 + $0xb0] sm:$0xff]
                %169 = vst [vmem:[%s145 + $0x58] sm:$0xff] %v168
                %v170 = vld [vmem:[%s144 + $0xc0] sm:$0xff]
                %171 = vst [vmem:[%s145 + $0x60] sm:$0xff] %v170
                %v172 = vld [vmem:[%s144 + $0xd0] sm:$0xff]
                %173 = vst [vmem:[%s145 + $0x68] sm:$0xff] %v172
                %v174 = vld [vmem:[%s144 + $0xe0] sm:$0xff]
                %175 = vst [vmem:[%s145 + $0x70] sm:$0xff] %v174
                %v176 = vld [vmem:[%s144 + $0xf0] sm:$0xff]
                %177 = vst [vmem:[%s145 + $0x78] sm:$0xff] %v176
              $region37: #{buir_nb_forward.10} parent=31 // loop_footer
                %s143 = sadd.s32 1, %s139
              $region38: #{buir_nb_forward.10} parent=31 // loop_footer_branch
                %138 = sbr.rel target = $region34
              $region39: #{buir_nb_forward.10} parent=31 // loop_exit
                _
            $region32: #{buir_nb_forward.10} parent=23 // pred_fallthru
              _
          $region24: #{buir_nb_forward.10} parent=19 // pred_fallthru
            _
          %222 = vnop
        $region20: #{buir_nb_forward.10} parent=15 // pred_fallthru
          _
        // Predicated region
        $region55: #{buir_nb_forward.10} parent=15 // pred_check
          %p223 = pneg %p68
        $region56: #{buir_nb_forward.10} parent=15 // pred_check_branch
          %225 = sbr.rel (%p223) target = $region58
        $region57: #{buir_nb_forward.10} parent=15 // pred_region
          %s226 = smul.u32 16, %s16
          %p227 = scmp.lt.s32.totalorder %s226, 31
          %s228 = scalar_select %p227, %s226, 31
          %s229 = smul.addr %s228, 8
          %s230 = scalar_lea.vmem %s1, %s229
          %s231 = smul.u32 16, %s16
        $region58: #{buir_nb_forward.10} parent=15 // pred_fallthru
          _
      $region16: #{buir_nb_forward.10} parent=5 // pred_fallthru
        _
      %p232 = scmp.le.s32.totalorder 1, %s8
      %p233 = scmp.lt.s32.totalorder %s8, 7
      %p234 = pnand %p232, %p233
      %p235 = pneg %p234
      // Predicated region
      $region59: #{buir_nb_forward.10} parent=5 // pred_check
        _
      $region60: #{buir_nb_forward.10} parent=5 // pred_check_branch
        %237 = sbr.rel (%p234) target = $region62
      $region61: #{buir_nb_forward.10} parent=5 // pred_region
        %s238 = ssub.s32 %s8, 1
        %s239 = sand.u32 %s35, 1
        %s240 = sand.u32 %s35, 1
        %s241 = smul.addr %s240, 128
        %s242 = scalar_lea.vmem [#allocation3], %s241
        // Predicated region
        $region63: #{buir_nb_forward.10} parent=61 // pred_check
          %p243 = pneg %p48
        $region64: #{buir_nb_forward.10} parent=61 // pred_check_branch
          %245 = sbr.rel (%p243) target = $region66
        $region65: #{buir_nb_forward.10} parent=61 // pred_region
          _
        $region66: #{buir_nb_forward.10} parent=61 // pred_fallthru
          _
        %s246 = sand.u32 %s35, 1
        %s247 = sand.u32 %s35, 1
        %s248 = smul.addr %s247, 128
        %s249 = scalar_lea.vmem [#allocation3], %s248
        %p250 = pneg %p48
        %p251 = pneg %p45
        %s252 = smul.u32 16, %s18
        %p253 = scmp.lt.s32.totalorder %s252, 31
        %s254 = scalar_select %p253, %s252, 31
        %s255 = smul.addr %s254, 8
        %s256 = scalar_lea.vmem %s1, %s255
        %p257 = pneg %p74
        %p258 = pneg %p71
        %p259 = pneg %p100
        %p260 = pneg %p97
        %s261 = smul.u32 16, %s17
        %p262 = scmp.lt.s32.totalorder %s261, 47
        %s263 = scalar_select %p262, %s261, 47
        %s264 = smul.addr %s263, 8
        %s265 = scalar_lea.vmem %s2, %s264
        %s266 = smul.u32 16, %s17
        %s267 = smul.u32 16, %s18
        %p268 = scmp.lt.s32.totalorder %s267, 31
        %s269 = scalar_select %p268, %s267, 31
        %s270 = smul.addr %s269, 8
        %s271 = scalar_lea.vmem %s1, %s270
        %s272 = smul.u32 16, %s18
        %s273 = smul.u32 16, %s17
        %p274 = scmp.lt.s32.totalorder %s273, 47
        %s275 = scalar_select %p274, %s273, 47
        %s276 = smul.addr %s275, 8
        %s277 = scalar_lea.vmem %s2, %s276
        %s278 = smul.u32 16, %s17
        %p279 = scmp.eq.s32.totalorder %s18, 0
        // Predicated region
        $region67: #{buir_nb_forward.10} parent=61 // pred_check
          %p280 = pneg %p279
        $region68: #{buir_nb_forward.10} parent=61 // pred_check_branch
          %282 = sbr.rel (%p280) target = $region70
        $region69: #{buir_nb_forward.10} parent=61 // pred_region
          %283 = vst [vmem:[#allocation2] sm:$0xff] 0.0
          %284 = vst [vmem:[#allocation2 + $0x8] sm:$0xff] 0.0
          %285 = vst [vmem:[#allocation2 + $0x10] sm:$0xff] 0.0
          %286 = vst [vmem:[#allocation2 + $0x18] sm:$0xff] 0.0
          %287 = vst [vmem:[#allocation2 + $0x20] sm:$0xff] 0.0
          %288 = vst [vmem:[#allocation2 + $0x28] sm:$0xff] 0.0
          %289 = vst [vmem:[#allocation2 + $0x30] sm:$0xff] 0.0
          %290 = vst [vmem:[#allocation2 + $0x38] sm:$0xff] 0.0
          %291 = vst [vmem:[#allocation2 + $0x40] sm:$0xff] 0.0
          %292 = vst [vmem:[#allocation2 + $0x48] sm:$0xff] 0.0
          %293 = vst [vmem:[#allocation2 + $0x50] sm:$0xff] 0.0
          %294 = vst [vmem:[#allocation2 + $0x58] sm:$0xff] 0.0
          %295 = vst [vmem:[#allocation2 + $0x60] sm:$0xff] 0.0
          %296 = vst [vmem:[#allocation2 + $0x68] sm:$0xff] 0.0
          %297 = vst [vmem:[#allocation2 + $0x70] sm:$0xff] 0.0
          %298 = vst [vmem:[#allocation2 + $0x78] sm:$0xff] 0.0
        $region70: #{buir_nb_forward.10} parent=61 // pred_fallthru
          _
        %v299 = vld [vmem:[#allocation2] sm:$0xff]
        %v300 = vld [vmem:[#allocation2 + $0x8] sm:$0xff]
        %v301 = vld [vmem:[#allocation2 + $0x10] sm:$0xff]
        %v302 = vld [vmem:[#allocation2 + $0x18] sm:$0xff]
        %v303 = vld [vmem:[#allocation2 + $0x20] sm:$0xff]
        %v304 = vld [vmem:[#allocation2 + $0x28] sm:$0xff]
        %v305 = vld [vmem:[#allocation2 + $0x30] sm:$0xff]
        %v306 = vld [vmem:[#allocation2 + $0x38] sm:$0xff]
        %v307 = vld [vmem:[#allocation2 + $0x40] sm:$0xff]
        %v308 = vld [vmem:[#allocation2 + $0x48] sm:$0xff]
        %v309 = vld [vmem:[#allocation2 + $0x50] sm:$0xff]
        %v310 = vld [vmem:[#allocation2 + $0x58] sm:$0xff]
        %v311 = vld [vmem:[#allocation2 + $0x60] sm:$0xff]
        %v312 = vld [vmem:[#allocation2 + $0x68] sm:$0xff]
        %v313 = vld [vmem:[#allocation2 + $0x70] sm:$0xff]
        %v314 = vld [vmem:[#allocation2 + $0x78] sm:$0xff]
        %v315 = vld [vmem:[%s242] sm:$0xff]
        %v316 = vld [vmem:[%s242 + $0x8] sm:$0xff]
        %v317 = vld [vmem:[%s242 + $0x10] sm:$0xff]
        %v318 = vld [vmem:[%s242 + $0x18] sm:$0xff]
        %v319 = vld [vmem:[%s242 + $0x20] sm:$0xff]
        %v320 = vld [vmem:[%s242 + $0x28] sm:$0xff]
        %v321 = vld [vmem:[%s242 + $0x30] sm:$0xff]
        %v322 = vld [vmem:[%s242 + $0x38] sm:$0xff]
        %v323 = vld [vmem:[%s242 + $0x40] sm:$0xff]
        %v324 = vld [vmem:[%s242 + $0x48] sm:$0xff]
        %v325 = vld [vmem:[%s242 + $0x50] sm:$0xff]
        %v326 = vld [vmem:[%s242 + $0x58] sm:$0xff]
        %v327 = vld [vmem:[%s242 + $0x60] sm:$0xff]
        %v328 = vld [vmem:[%s242 + $0x68] sm:$0xff]
        %v329 = vld [vmem:[%s242 + $0x70] sm:$0xff]
        %v330 = vld [vmem:[%s242 + $0x78] sm:$0xff]
        %v331 = vld [vmem:[%s271] sm:$0xff]
        %v332 = vld [vmem:[%s271 + $0x8] sm:$0xff]
        %v333 = vld [vmem:[%s271 + $0x10] sm:$0xff]
        %v334 = vld [vmem:[%s271 + $0x18] sm:$0xff]
        %v335 = vld [vmem:[%s271 + $0x20] sm:$0xff]
        %v336 = vld [vmem:[%s271 + $0x28] sm:$0xff]
        %v337 = vld [vmem:[%s271 + $0x30] sm:$0xff]
        %v338 = vld [vmem:[%s271 + $0x38] sm:$0xff]
        %v339 = vld [vmem:[%s271 + $0x40] sm:$0xff]
        %v340 = vld [vmem:[%s271 + $0x48] sm:$0xff]
        %v341 = vld [vmem:[%s271 + $0x50] sm:$0xff]
        %v342 = vld [vmem:[%s271 + $0x58] sm:$0xff]
        %v343 = vld [vmem:[%s271 + $0x60] sm:$0xff]
        %v344 = vld [vmem:[%s271 + $0x68] sm:$0xff]
        %v345 = vld [vmem:[%s271 + $0x70] sm:$0xff]
        %v346 = vld [vmem:[%s271 + $0x78] sm:$0xff]
        %347 = vmatprep.subr.mxu0 0.0
        %348 = vmatpush1.msra.mxu0 %v331
        %349 = vmatprep.subr.mxu0 0.0
        %350 = vmatpush1.msra.mxu0 %v332
        %351 = vmatprep.subr.mxu0 0.0
        %352 = vmatpush1.msra.mxu0 %v333
        %353 = vmatprep.subr.mxu0 0.0
        %354 = vmatpush1.msra.mxu0 %v334
        %355 = vmatprep.subr.mxu0 0.0
        %356 = vmatpush1.msra.mxu0 %v335
        %357 = vmatprep.subr.mxu0 0.0
        %358 = vmatpush1.msra.mxu0 %v336
        %359 = vmatprep.subr.mxu0 0.0
        %360 = vmatpush1.msra.mxu0 %v337
        %361 = vmatprep.subr.mxu0 0.0
        %362 = vmatpush1.msra.mxu0 %v338
        %363 = vmatprep.subr.mxu0 0.0
        %364 = vmatpush1.msra.mxu0 %v339
        %365 = vmatprep.subr.mxu0 0.0
        %366 = vmatpush1.msra.mxu0 %v340
        %367 = vmatprep.subr.mxu0 0.0
        %368 = vmatpush1.msra.mxu0 %v341
        %369 = vmatprep.subr.mxu0 0.0
        %370 = vmatpush1.msra.mxu0 %v342
        %371 = vmatprep.subr.mxu0 0.0
        %372 = vmatpush1.msra.mxu0 %v343
        %373 = vmatprep.subr.mxu0 0.0
        %374 = vmatpush1.msra.mxu0 %v344
        %375 = vmatprep.subr.mxu0 0.0
        %376 = vmatpush1.msra.mxu0 %v345
        %377 = vmatprep.subr.mxu0 0.0
        %378 = vmatpush1.msra.mxu0 %v346
        %379 = vmatprep.subr.mxu0 0.0
        %380 = vmatpush1.msra.mxu0 0.0
        %381 = vmatprep.subr.mxu0 0.0
        %382 = vmatpush1.msra.mxu0 0.0
        %383 = vmatprep.subr.mxu0 0.0
        %384 = vmatpush1.msra.mxu0 0.0
        %385 = vmatprep.subr.mxu0 0.0
        %386 = vmatpush1.msra.mxu0 0.0
        %387 = vmatprep.subr.mxu0 0.0
        %388 = vmatpush1.msra.mxu0 0.0
        %389 = vmatprep.subr.mxu0 0.0
        %390 = vmatpush1.msra.mxu0 0.0
        %391 = vmatprep.subr.mxu0 0.0
        %392 = vmatpush1.msra.mxu0 0.0
        %393 = vmatprep.subr.mxu0 0.0
        %394 = vmatpush1.msra.mxu0 0.0
        %395 = vmatprep.subr.mxu0 0.0
        %396 = vmatpush1.msra.mxu0 0.0
        %397 = vmatprep.subr.mxu0 0.0
        %398 = vmatpush1.msra.mxu0 0.0
        %399 = vmatprep.subr.mxu0 0.0
        %400 = vmatpush1.msra.mxu0 0.0
        %401 = vmatprep.subr.mxu0 0.0
        %402 = vmatpush1.msra.mxu0 0.0
        %403 = vmatprep.subr.mxu0 0.0
        %404 = vmatpush1.msra.mxu0 0.0
        %405 = vmatprep.subr.mxu0 0.0
        %406 = vmatpush1.msra.mxu0 0.0
        %407 = vmatprep.subr.mxu0 0.0
        %408 = vmatpush1.msra.mxu0 0.0
        %409 = vmatprep.subr.mxu0 0.0
        %410 = vmatpush1.msra.mxu0 0.0
        %411 = vmatprep.mubr.f32.mxu0 0.0
        %412 = vmatmul.mubr.f32.gmra.mrb[0].mxu0 %v315
        %v413 = vpop.f32.mrb[0].mxu0
        %v414 = vadd.f32 0.0, %v413
        %v415 = vpop.f32.mrb[0].mxu0
        %416 = vmatprep.mubr.f32.mxu0 0.0
        %417 = vmatmul.mubr.f32.gmra.mrb[0].mxu0 %v316
        %v418 = vpop.f32.mrb[0].mxu0
        %v419 = vadd.f32 0.0, %v418
        %v420 = vpop.f32.mrb[0].mxu0
        %421 = vmatprep.mubr.f32.mxu0 0.0
        %422 = vmatmul.mubr.f32.gmra.mrb[0].mxu0 %v317
        %v423 = vpop.f32.mrb[0].mxu0
        %v424 = vadd.f32 0.0, %v423
        %v425 = vpop.f32.mrb[0].mxu0
        %426 = vmatprep.mubr.f32.mxu0 0.0
        %427 = vmatmul.mubr.f32.gmra.mrb[0].mxu0 %v318
        %v428 = vpop.f32.mrb[0].mxu0
        %v429 = vadd.f32 0.0, %v428
        %v430 = vpop.f32.mrb[0].mxu0
        %431 = vmatprep.mubr.f32.mxu0 0.0
        %432 = vmatmul.mubr.f32.gmra.mrb[0].mxu0 %v319
        %v433 = vpop.f32.mrb[0].mxu0
        %v434 = vadd.f32 0.0, %v433
        %v435 = vpop.f32.mrb[0].mxu0
        %436 = vmatprep.mubr.f32.mxu0 0.0
        %437 = vmatmul.mubr.f32.gmra.mrb[0].mxu0 %v320
        %v438 = vpop.f32.mrb[0].mxu0
        %v439 = vadd.f32 0.0, %v438
        %v440 = vpop.f32.mrb[0].mxu0
        %441 = vmatprep.mubr.f32.mxu0 0.0
        %442 = vmatmul.mubr.f32.gmra.mrb[0].mxu0 %v321
        %v443 = vpop.f32.mrb[0].mxu0
        %v444 = vadd.f32 0.0, %v443
        %v445 = vpop.f32.mrb[0].mxu0
        %446 = vmatprep.mubr.f32.mxu0 0.0
        %447 = vmatmul.mubr.f32.gmra.mrb[0].mxu0 %v322
        %v448 = vpop.f32.mrb[0].mxu0
        %v449 = vadd.f32 0.0, %v448
        %v450 = vpop.f32.mrb[0].mxu0
        %451 = vmatprep.mubr.f32.mxu0 0.0
        %452 = vmatmul.mubr.f32.gmra.mrb[0].mxu0 %v323
        %v453 = vpop.f32.mrb[0].mxu0
        %v454 = vadd.f32 0.0, %v453
        %v455 = vpop.f32.mrb[0].mxu0
        %456 = vmatprep.mubr.f32.mxu0 0.0
        %457 = vmatmul.mubr.f32.gmra.mrb[0].mxu0 %v324
        %v458 = vpop.f32.mrb[0].mxu0
        %v459 = vadd.f32 0.0, %v458
        %v460 = vpop.f32.mrb[0].mxu0
        %461 = vmatprep.mubr.f32.mxu0 0.0
        %462 = vmatmul.mubr.f32.gmra.mrb[0].mxu0 %v325
        %v463 = vpop.f32.mrb[0].mxu0
        %v464 = vadd.f32 0.0, %v463
        %v465 = vpop.f32.mrb[0].mxu0
        %466 = vmatprep.mubr.f32.mxu0 0.0
        %467 = vmatmul.mubr.f32.gmra.mrb[0].mxu0 %v326
        %v468 = vpop.f32.mrb[0].mxu0
        %v469 = vadd.f32 0.0, %v468
        %v470 = vpop.f32.mrb[0].mxu0
        %471 = vmatprep.mubr.f32.mxu0 0.0
        %472 = vmatmul.mubr.f32.gmra.mrb[0].mxu0 %v327
        %v473 = vpop.f32.mrb[0].mxu0
        %v474 = vadd.f32 0.0, %v473
        %v475 = vpop.f32.mrb[0].mxu0
        %476 = vmatprep.mubr.f32.mxu0 0.0
        %477 = vmatmul.mubr.f32.gmra.mrb[0].mxu0 %v328
        %v478 = vpop.f32.mrb[0].mxu0
        %v479 = vadd.f32 0.0, %v478
        %v480 = vpop.f32.mrb[0].mxu0
        %481 = vmatprep.mubr.f32.mxu0 0.0
        %482 = vmatmul.mubr.f32.gmra.mrb[0].mxu0 %v329
        %v483 = vpop.f32.mrb[0].mxu0
        %v484 = vadd.f32 0.0, %v483
        %v485 = vpop.f32.mrb[0].mxu0
        %486 = vmatprep.mubr.f32.mxu0 0.0
        %487 = vmatmul.mubr.f32.gmra.mrb[0].mxu0 %v330
        %v488 = vpop.f32.mrb[0].mxu0
        %v489 = vadd.f32 0.0, %v488
        %v490 = vpop.f32.mrb[0].mxu0
        %491 = vdwg.mxu0
        %v492 = vadd.f32 %v299, %v414
        %v493 = vadd.f32 %v300, %v419
        %v494 = vadd.f32 %v301, %v424
        %v495 = vadd.f32 %v302, %v429
        %v496 = vadd.f32 %v303, %v434
        %v497 = vadd.f32 %v304, %v439
        %v498 = vadd.f32 %v305, %v444
        %v499 = vadd.f32 %v306, %v449
        %v500 = vadd.f32 %v307, %v454
        %v501 = vadd.f32 %v308, %v459
        %v502 = vadd.f32 %v309, %v464
        %v503 = vadd.f32 %v310, %v469
        %v504 = vadd.f32 %v311, %v474
        %v505 = vadd.f32 %v312, %v479
        %v506 = vadd.f32 %v313, %v484
        %v507 = vadd.f32 %v314, %v489
        %508 = vst [vmem:[#allocation2] sm:$0xff] %v492
        %509 = vst [vmem:[#allocation2 + $0x8] sm:$0xff] %v493
        %510 = vst [vmem:[#allocation2 + $0x10] sm:$0xff] %v494
        %511 = vst [vmem:[#allocation2 + $0x18] sm:$0xff] %v495
        %512 = vst [vmem:[#allocation2 + $0x20] sm:$0xff] %v496
        %513 = vst [vmem:[#allocation2 + $0x28] sm:$0xff] %v497
        %514 = vst [vmem:[#allocation2 + $0x30] sm:$0xff] %v498
        %515 = vst [vmem:[#allocation2 + $0x38] sm:$0xff] %v499
        %516 = vst [vmem:[#allocation2 + $0x40] sm:$0xff] %v500
        %517 = vst [vmem:[#allocation2 + $0x48] sm:$0xff] %v501
        %518 = vst [vmem:[#allocation2 + $0x50] sm:$0xff] %v502
        %519 = vst [vmem:[#allocation2 + $0x58] sm:$0xff] %v503
        %520 = vst [vmem:[#allocation2 + $0x60] sm:$0xff] %v504
        %521 = vst [vmem:[#allocation2 + $0x68] sm:$0xff] %v505
        %522 = vst [vmem:[#allocation2 + $0x70] sm:$0xff] %v506
        %523 = vst [vmem:[#allocation2 + $0x78] sm:$0xff] %v507
        %p524 = scmp.eq.s32.totalorder %s18, 1
        // Predicated region
        $region71: #{buir_nb_forward.10} parent=61 // pred_check
          %p525 = pneg %p524
        $region72: #{buir_nb_forward.10} parent=61 // pred_check_branch
          %527 = sbr.rel (%p525) target = $region74
        $region73: #{buir_nb_forward.10} parent=61 // pred_region
          %v528 = vld [vmem:[#allocation2] sm:$0xff]
          %v529 = vld [vmem:[#allocation2 + $0x8] sm:$0xff]
          %v530 = vld [vmem:[#allocation2 + $0x10] sm:$0xff]
          %v531 = vld [vmem:[#allocation2 + $0x18] sm:$0xff]
          %v532 = vld [vmem:[#allocation2 + $0x20] sm:$0xff]
          %v533 = vld [vmem:[#allocation2 + $0x28] sm:$0xff]
          %v534 = vld [vmem:[#allocation2 + $0x30] sm:$0xff]
          %v535 = vld [vmem:[#allocation2 + $0x38] sm:$0xff]
          %v536 = vld [vmem:[#allocation2 + $0x40] sm:$0xff]
          %v537 = vld [vmem:[#allocation2 + $0x48] sm:$0xff]
          %v538 = vld [vmem:[#allocation2 + $0x50] sm:$0xff]
          %v539 = vld [vmem:[#allocation2 + $0x58] sm:$0xff]
          %v540 = vld [vmem:[#allocation2 + $0x60] sm:$0xff]
          %v541 = vld [vmem:[#allocation2 + $0x68] sm:$0xff]
          %v542 = vld [vmem:[#allocation2 + $0x70] sm:$0xff]
          %v543 = vld [vmem:[#allocation2 + $0x78] sm:$0xff]
          %544 = vst [vmem:[%s277] sm:$0xff] %v528
          %545 = vst [vmem:[%s277 + $0x8] sm:$0xff] %v529
          %546 = vst [vmem:[%s277 + $0x10] sm:$0xff] %v530
          %547 = vst [vmem:[%s277 + $0x18] sm:$0xff] %v531
          %548 = vst [vmem:[%s277 + $0x20] sm:$0xff] %v532
          %549 = vst [vmem:[%s277 + $0x28] sm:$0xff] %v533
          %550 = vst [vmem:[%s277 + $0x30] sm:$0xff] %v534
          %551 = vst [vmem:[%s277 + $0x38] sm:$0xff] %v535
          %552 = vst [vmem:[%s277 + $0x40] sm:$0xff] %v536
          %553 = vst [vmem:[%s277 + $0x48] sm:$0xff] %v537
          %554 = vst [vmem:[%s277 + $0x50] sm:$0xff] %v538
          %555 = vst [vmem:[%s277 + $0x58] sm:$0xff] %v539
          %556 = vst [vmem:[%s277 + $0x60] sm:$0xff] %v540
          %557 = vst [vmem:[%s277 + $0x68] sm:$0xff] %v541
          %558 = vst [vmem:[%s277 + $0x70] sm:$0xff] %v542
          %559 = vst [vmem:[%s277 + $0x78] sm:$0xff] %v543
        $region74: #{buir_nb_forward.10} parent=61 // pred_fallthru
          _
        %s560 = smul.u32 16, %s17
        %p561 = scmp.lt.s32.totalorder %s560, 47
        %s562 = scalar_select %p561, %s560, 47
        %s563 = smul.addr %s562, 8
        %s564 = scalar_lea.vmem %s2, %s563
        // Predicated region
        $region75: #{buir_nb_forward.10} parent=61 // pred_check
          %p565 = pneg %p97
        $region76: #{buir_nb_forward.10} parent=61 // pred_check_branch
          %567 = sbr.rel (%p565) target = $region78
        $region77: #{buir_nb_forward.10} parent=61 // pred_region
          %s568 = smul.u32 16, %s17
        $region78: #{buir_nb_forward.10} parent=61 // pred_fallthru
          _
      $region62: #{buir_nb_forward.10} parent=5 // pred_fallthru
        _
      %p569 = scmp.le.s32.totalorder 2, %s8
      // Predicated region
      $region79: #{buir_nb_forward.10} parent=5 // pred_check
        %p570 = pneg %p569
      $region80: #{buir_nb_forward.10} parent=5 // pred_check_branch
        %572 = sbr.rel (%p570) target = $region82
      $region81: #{buir_nb_forward.10} parent=5 // pred_region
        %s573 = ssub.s32 %s8, 2
        // Predicated region
        $region83: #{buir_nb_forward.10} parent=81 // pred_check
          %p574 = pneg %p103
        $region84: #{buir_nb_forward.10} parent=81 // pred_check_branch
          %576 = sbr.rel (%p574) target = $region86
        $region85: #{buir_nb_forward.10} parent=81 // pred_region
          %s577 = smul.u32 16, %s19
          %p578 = scmp.lt.s32.totalorder %s577, 47
          %s579 = scalar_select %p578, %s577, 47
          %s580 = smul.addr %s579, 8
          %s581 = scalar_lea.vmem %s2, %s580
        $region86: #{buir_nb_forward.10} parent=81 // pred_fallthru
          _
      $region82: #{buir_nb_forward.10} parent=5 // pred_fallthru
        _
    $region6: #{buir_nb_forward.10} parent=1 // loop_footer
      %s12 = sadd.s32 1, %s8
    $region7: #{buir_nb_forward.10} parent=1 // loop_footer_branch
      %7 = sbr.rel target = $region3
    $region8: #{buir_nb_forward.10} parent=1 // loop_exit
      _

// kernel: buir_nb_forward.13
$region0: #{buir_nb_forward.13}
  #allocation0 [shape = 'u32[]', space=smem, size = 0x4, offset = 0x4, fixed_abs, tag = 'smem constant byte address 0x4 - core index']
  #allocation1 [shape = 'u32[144,128]{1,0:T(1,128)}', space=vmem, size = 0x12000, scoped, tag = 'internal scratch']
  %s0 = inlined_call_operand.vmem [shape: f32[32,32], index: 0, kind: input, shape index: {}]
  %s1 = inlined_call_operand.vmem [shape: f32[32,128], index: 1, kind: input, shape index: {}]
  %s2 = inlined_call_operand.vmem [shape: f32[1,128], index: 2, kind: input, shape index: {}]
  %s3 = inlined_call_operand.vmem [shape: f32[32,128], index: 3, kind: output, shape index: {}]
  %s4 = sld [smem:[#allocation0]]
  $region22: #{buir_nb_forward.13} parent=0
    _
  %s6 = ssub.s32 1, %s4
  %s7 = scalar_select 0, %s6, %s4
  // Predicated region
  $region2: #{buir_nb_forward.13} parent=0 // pred_check
    _
  $region3: #{buir_nb_forward.13} parent=0 // pred_check_branch
    %9 = sbr.rel (0) target = $region5
  $region4: #{buir_nb_forward.13} parent=0 // pred_region
    _
  $region5: #{buir_nb_forward.13} parent=0 // pred_fallthru
    _
  // Predicated region
  $region6: #{buir_nb_forward.13} parent=0 // pred_check
    _
  $region7: #{buir_nb_forward.13} parent=0 // pred_check_branch
    %11 = sbr.rel (0) target = $region9
  $region8: #{buir_nb_forward.13} parent=0 // pred_region
    _
  $region9: #{buir_nb_forward.13} parent=0 // pred_fallthru
    _
  // Predicated region
  $region10: #{buir_nb_forward.13} parent=0 // pred_check
    _
  $region11: #{buir_nb_forward.13} parent=0 // pred_check_branch
    %13 = sbr.rel (0) target = $region13
  $region12: #{buir_nb_forward.13} parent=0 // pred_region
    _
  $region13: #{buir_nb_forward.13} parent=0 // pred_fallthru
    _
  %v14 = vld [vmem:[%s0] sm:$0xff]
  %v15 = vld [vmem:[%s0 + $0x8] sm:$0xff]
  %v16 = vld [vmem:[%s0 + $0x10] sm:$0xff]
  %v17 = vld [vmem:[%s0 + $0x18] sm:$0xff]
  %v18 = vld [vmem:[%s1] sm:$0xff]
  %v19 = vld [vmem:[%s1 + $0x8] sm:$0xff]
  %v20 = vld [vmem:[%s1 + $0x10] sm:$0xff]
  %v21 = vld [vmem:[%s1 + $0x18] sm:$0xff]
  %v22 = vld [vmem:[%s2] sm:$0x1]
  %v24 = vlaneseq
  %v25 = vshrl.u32 %v24, 7
  %v26 = vsub.s32 0, %v25
  %v27 = vrot.slane %v22, %v26
  %vm29 = vcmask 261120
  %v31 = vsel %vm29, %v14, 0
  %v34 = vsel %vm29, %v15, 0
  %v37 = vsel %vm29, %v16, 0
  %v40 = vsel %vm29, %v17, 0
  %42 = vmatprep.subr.mxu0 0.0
  %43 = vmatpush1.msra.mxu0 %v18
  %44 = vmatprep.subr.mxu0 0.0
  %45 = vmatpush1.msra.mxu0 %v19
  %46 = vmatprep.subr.mxu0 0.0
  %47 = vmatpush1.msra.mxu0 %v20
  %48 = vmatprep.subr.mxu0 0.0
  %49 = vmatpush1.msra.mxu0 %v21
  %50 = vmatprep.subr.mxu0 0.0
  %51 = vmatpush1.msra.mxu0 0.0
  %52 = vmatprep.subr.mxu0 0.0
  %53 = vmatpush1.msra.mxu0 0.0
  %54 = vmatprep.subr.mxu0 0.0
  %55 = vmatpush1.msra.mxu0 0.0
  %56 = vmatprep.subr.mxu0 0.0
  %57 = vmatpush1.msra.mxu0 0.0
  %58 = vmatprep.subr.mxu0 0.0
  %59 = vmatpush1.msra.mxu0 0.0
  %60 = vmatprep.subr.mxu0 0.0
  %61 = vmatpush1.msra.mxu0 0.0
  %62 = vmatprep.subr.mxu0 0.0
  %63 = vmatpush1.msra.mxu0 0.0
  %64 = vmatprep.subr.mxu0 0.0
  %65 = vmatpush1.msra.mxu0 0.0
  %66 = vmatprep.subr.mxu0 0.0
  %67 = vmatpush1.msra.mxu0 0.0
  %68 = vmatprep.subr.mxu0 0.0
  %69 = vmatpush1.msra.mxu0 0.0
  %70 = vmatprep.subr.mxu0 0.0
  %71 = vmatpush1.msra.mxu0 0.0
  %72 = vmatprep.subr.mxu0 0.0
  %73 = vmatpush1.msra.mxu0 0.0
  %74 = vmatprep.subr.mxu0 0.0
  %75 = vmatpush1.msra.mxu0 0.0
  %76 = vmatprep.subr.mxu0 0.0
  %77 = vmatpush1.msra.mxu0 0.0
  %78 = vmatprep.subr.mxu0 0.0
  %79 = vmatpush1.msra.mxu0 0.0
  %80 = vmatprep.subr.mxu0 0.0
  %81 = vmatpush1.msra.mxu0 0.0
  %82 = vmatprep.subr.mxu0 0.0
  %83 = vmatpush1.msra.mxu0 0.0
  %84 = vmatprep.subr.mxu0 0.0
  %85 = vmatpush1.msra.mxu0 0.0
  %86 = vmatprep.subr.mxu0 0.0
  %87 = vmatpush1.msra.mxu0 0.0
  %88 = vmatprep.subr.mxu0 0.0
  %89 = vmatpush1.msra.mxu0 0.0
  %90 = vmatprep.subr.mxu0 0.0
  %91 = vmatpush1.msra.mxu0 0.0
  %92 = vmatprep.subr.mxu0 0.0
  %93 = vmatpush1.msra.mxu0 0.0
  %94 = vmatprep.subr.mxu0 0.0
  %95 = vmatpush1.msra.mxu0 0.0
  %96 = vmatprep.subr.mxu0 0.0
  %97 = vmatpush1.msra.mxu0 0.0
  %98 = vmatprep.subr.mxu0 0.0
  %99 = vmatpush1.msra.mxu0 0.0
  %100 = vmatprep.subr.mxu0 0.0
  %101 = vmatpush1.msra.mxu0 0.0
  %102 = vmatprep.subr.mxu0 0.0
  %103 = vmatpush1.msra.mxu0 0.0
  %104 = vmatprep.subr.mxu0 0.0
  %105 = vmatpush1.msra.mxu0 0.0
  %106 = vmatprep.mubr.f32.mxu0 0.0
  %107 = vmatmul.mubr.f32.gmra.mrb[0].mxu0 %v31
  %v108 = vpop.f32.mrb[0].mxu0
  %v109 = vadd.f32 %v27, %v108
  %v110 = vpop.f32.mrb[0].mxu0
  %111 = vmatprep.mubr.f32.mxu0 0.0
  %112 = vmatmul.mubr.f32.gmra.mrb[0].mxu0 %v34
  %v113 = vpop.f32.mrb[0].mxu0
  %v114 = vadd.f32 %v27, %v113
  %v115 = vpop.f32.mrb[0].mxu0
  %116 = vmatprep.mubr.f32.mxu0 0.0
  %117 = vmatmul.mubr.f32.gmra.mrb[0].mxu0 %v37
  %v118 = vpop.f32.mrb[0].mxu0
  %v119 = vadd.f32 %v27, %v118
  %v120 = vpop.f32.mrb[0].mxu0
  %121 = vmatprep.mubr.f32.mxu0 0.0
  %122 = vmatmul.mubr.f32.gmra.mrb[0].mxu0 %v40
  %v123 = vpop.f32.mrb[0].mxu0
  %v124 = vadd.f32 %v27, %v123
  %v125 = vpop.f32.mrb[0].mxu0
  %126 = vdwg.mxu0
  %127 = vst [vmem:[%s3] sm:$0xff] %v109
  %128 = vst [vmem:[%s3 + $0x8] sm:$0xff] %v114
  %129 = vst [vmem:[%s3 + $0x10] sm:$0xff] %v119
  %130 = vst [vmem:[%s3 + $0x18] sm:$0xff] %v124
  // Predicated region
  $region14: #{buir_nb_forward.13} parent=0 // pred_check
    _
  $region15: #{buir_nb_forward.13} parent=0 // pred_check_branch
    %132 = sbr.rel (0) target = $region17
  $region16: #{buir_nb_forward.13} parent=0 // pred_region
    _
  $region17: #{buir_nb_forward.13} parent=0 // pred_fallthru
    _
  // Predicated region
  $region18: #{buir_nb_forward.13} parent=0 // pred_check
    _
  $region19: #{buir_nb_forward.13} parent=0 // pred_check_branch
    %134 = sbr.rel (0) target = $region21
  $region20: #{buir_nb_forward.13} parent=0 // pred_region
    _
  $region21: #{buir_nb_forward.13} parent=0 // pred_fallthru
    _

</llo_original>
